<compile_context>
chip_gen: v7x
topology: tpu7x:2x2x1
jax: 0.10.0
libtpu: 0.0.40
codegen_flags: <defaults>
</compile_context>

<pallas_src>
import functools

import jax
import jax.numpy as jnp
from jax.experimental import pallas as pl
from jax.experimental.pallas import tpu as pltpu


def _round_up(x, m):
    return ((x + m - 1) // m) * m


def _wave_kernel(xprev_ref, xmain_ref, w_ref, bias_ref, corr_ref, o_ref,
                 *, R, HF, TT, BC0, compute_dtype):
    """One time tile of the composed R-tap causal conv.

    xprev_ref: (HF, B*C0)   last HF timesteps before this tile (contents are
                            irrelevant on tile 0: zeroed in-kernel).
    xmain_ref: (TT, B*C0)   this tile's timesteps (tail rows of the last tile
                            may be out-of-bounds garbage; those output rows are
                            masked on writeback).
    w_ref:     (R*B*C0, B*H) composed, batch-block-diagonal weights, tap-major.
    bias_ref:  (1, B*H)     steady-state bias b_eff tiled over batch lanes.
    corr_ref:  (HF, B*H)    zero-input-response correction for t < HF.
    o_ref:     (TT, B*H)
    """
    tile = pl.program_id(0)

    prev = xprev_ref[...]
    # Causal zero history for the very first tile only (8x32 select, trivial).
    prev = jnp.where(tile == 0, jnp.zeros_like(prev), prev)
    win = jnp.concatenate([prev, xmain_ref[...]], axis=0).astype(compute_dtype)

    # Tap k contributes x[t-k] @ A_k; for output row j, x[t-k] sits at window
    # row j + HF - k.  All accumulation is f32 on the MXU.
    acc = jnp.dot(win[HF:HF + TT, :], w_ref[0:BC0, :],
                  preferred_element_type=jnp.float32)
    acc = acc + bias_ref[...]
    for k in range(1, R):
        acc = acc + jnp.dot(win[HF - k:HF - k + TT, :],
                            w_ref[k * BC0:(k + 1) * BC0, :],
                            preferred_element_type=jnp.float32)

    o_ref[...] = acc.astype(o_ref.dtype)

    # Early timesteps of the original layered module see zero-padded
    # *intermediate* activations, so their effective bias differs; fix the
    # first HF rows of tile 0 only (off the hot path).
    @pl.when(tile == 0)
    def _():
        o_ref[0:HF, :] = (acc[0:HF, :] + corr_ref[...]).astype(o_ref.dtype)


def _compose_taps(params, C0, H):
    """Compose the L linear causal convs into one R-tap conv + affine terms.

    Only valid because `Wave` has no nonlinearity between its conv layers.
    Returns (A[k] list of (C0,H), b_eff (H,), corr (HF,H), halo, R, HF).
    """
    # Linear part: polynomial (in z^-1) product of the per-layer matrix filters,
    # row-vector convention (Cin, Cout).
    filt = {0: jnp.eye(C0, dtype=jnp.float32)}
    for (w, _b, d) in params:
        m0 = jnp.asarray(w[:, :, 0], jnp.float32).T   # tap on x[t-d]
        m1 = jnp.asarray(w[:, :, 1], jnp.float32).T   # tap on x[t]
        new = {}
        for k, f in filt.items():
            new[k] = new.get(k, 0.0) + f @ m1
            new[k + d] = new.get(k + d, 0.0) + f @ m0
        filt = new

    halo = sum(int(d) for (_, _, d) in params)
    R = halo + 1
    A = [filt.get(k, jnp.zeros((C0, H), jnp.float32)) for k in range(R)]

    # Zero-input response zr[t] (layered network output for x == 0); constant
    # (= b_eff) once t >= sum(dilations of layers 1..L-1) <= HF - 1.
    HF = _round_up(max(halo, 1), 8)     # lookback rows fetched per tile
    zr = jnp.zeros((HF, C0), jnp.float32)
    for (w, b, d) in params:
        m0 = jnp.asarray(w[:, :, 0], jnp.float32).T
        m1 = jnp.asarray(w[:, :, 1], jnp.float32).T
        shifted = jnp.concatenate(
            [jnp.zeros((d, zr.shape[1]), jnp.float32), zr[:HF - d]], axis=0)
        zr = zr @ m1 + shifted @ m0 + jnp.asarray(b, jnp.float32)[None, :]
    b_eff = zr[HF - 1]
    corr = zr - b_eff[None, :]          # nonzero only for the first few rows
    return A, b_eff, corr, halo, R, HF


def wave_forward(x, params, time_tile=None, compute_dtype=jnp.float32,
                 vmem_budget_bytes=20 * 1024 * 1024):
    """Fused Wave forward.

    x: (T, B, C0); params: list of (weight (Cout, Cin, 2), bias (Cout,), dilation).
    Returns (T, B, Cout_last).
    """
    T, B, C0 = x.shape
    H = params[-1][0].shape[0]

    # NOTE: composition below is only valid while Wave stays activation-free.
    A, b_eff, corr, halo, R, HF = _compose_taps(params, C0, H)

    BC0, BH = B * C0, B * H
    eye_b = jnp.eye(B, dtype=jnp.float32)
    # (R*B*C0, B*H): tap-major stack of batch-block-diagonal weights.
    w_bd = jnp.concatenate([jnp.kron(eye_b, A[k]) for k in range(R)], axis=0)
    w_bd = w_bd.astype(compute_dtype)
    bias_row = jnp.tile(b_eff, (B,)).reshape(1, BH)      # (1, BH), f32
    corr_rows = jnp.tile(corr, (1, B))                   # (HF, BH), f32

    # Time-tile selection: big tiles (amortize per-grid-step overhead / hit the
    # HBM roofline) sized against a VMEM budget; even tile count so v7x's two
    # TensorCores both get work under dimension_semantics=("parallel",).
    in_lanes = _round_up(BC0, 128)
    out_lanes = _round_up(BH, 128)
    per_row_bytes = 4 * (4 * in_lanes + 4 * out_lanes)   # dbl-buffered I/O + temps
    if time_tile is None:
        TT = (vmem_budget_bytes // per_row_bytes) // HF * HF
        TT = max(HF, min(TT, 8192))
    else:
        TT = max(HF, _round_up(int(time_tile), HF))
    TT = min(TT, _round_up(T, HF))
    nT = -(-T // TT)
    if time_tile is None and nT > 1 and nT % 2 == 1:
        TT = max(HF, _round_up(-(-T // (nT + 1)), HF))
        nT = -(-T // TT)

    x_rows = x.reshape(T, BC0)          # rows = timesteps, lanes = (batch, ch)
    tt_blocks = TT // HF

    kernel = functools.partial(_wave_kernel, R=R, HF=HF, TT=TT, BC0=BC0,
                               compute_dtype=compute_dtype)

    flops = 2 * nT * TT * (R * BC0) * BH
    bytes_accessed = int(4 * (T * BC0 + nT * HF * BC0 + T * BH)
                         + w_bd.size * jnp.dtype(compute_dtype).itemsize)

    out = pl.pallas_call(
        kernel,
        out_shape=jax.ShapeDtypeStruct((T, BH), x.dtype),
        grid=(nT,),
        in_specs=[
            # HF-row lookback window; block index clamped to 0 on tile 0 (the
            # kernel zeroes it there), so no negative / OOB fetch ever happens.
            pl.BlockSpec((HF, BC0),
                         lambda i: (jnp.maximum(i * tt_blocks - 1, 0), 0)),
            # This tile's own TT timesteps.
            pl.BlockSpec((TT, BC0), lambda i: (i, 0)),
            # Constants: block index never changes, so they are fetched once.
            pl.BlockSpec((R * BC0, BH), lambda i: (0, 0)),
            pl.BlockSpec((1, BH), lambda i: (0, 0)),
            pl.BlockSpec((HF, BH), lambda i: (0, 0)),
        ],
        out_specs=pl.BlockSpec((TT, BH), lambda i: (i, 0)),
        compiler_params=pltpu.CompilerParams(
            dimension_semantics=("parallel",),
            vmem_limit_bytes=48 * 1024 * 1024),
        cost_estimate=pl.CostEstimate(flops=int(flops), transcendentals=0,
                                      bytes_accessed=bytes_accessed),
    )(x_rows, x_rows, w_bd, bias_row, corr_rows)

    return out.reshape(T, B, H)


def init_wave_params(key, input_size, hidden_size, layers=3):
    """Deterministic parameter init mimicking nn.Conv1d defaults (uniform)."""
    params = []
    prev = input_size
    for layer in range(layers):
        key, kw, kb = jax.random.split(key, 3)
        ksize = 2
        bound = 1.0 / float(prev * ksize) ** 0.5
        weight = jax.random.uniform(kw, (hidden_size, prev, ksize),
                                    jnp.float32, -bound, bound)
        bias = jax.random.uniform(kb, (hidden_size,), jnp.float32, -bound, bound)
        params.append((weight, bias, 2 ** layer))
        prev = hidden_size
    return params


def wave_reference(x, params):
    """Pure-JAX reference of the PyTorch forward (for validation)."""
    data = x
    for (weight, bias, dilation) in params:
        T, B, Cin = data.shape
        xp = jnp.concatenate(
            [jnp.zeros((dilation, B, Cin), data.dtype), data], axis=0)
        w0 = weight[:, :, 0]  # (Cout, Cin) -> applied to x[t - d]
        w1 = weight[:, :, 1]  # (Cout, Cin) -> applied to x[t]
        data = (jnp.einsum('tbc,oc->tbo', xp[:T], w0)
                + jnp.einsum('tbc,oc->tbo', xp[dilation:dilation + T], w1)
                + bias[None, None, :])
    return data


if __name__ == "__main__":
    T, B, input_size, hidden_size, layers = 80, 8, 4, 32, 3

    key = jax.random.PRNGKey(0)
    key, kx = jax.random.split(key)
    x = jax.random.normal(kx, (T, B, input_size), jnp.float32)
    params = init_wave_params(key, input_size, hidden_size, layers)

    ref = wave_reference(x, params)

    # Multi-tile path: 3 tiles of 32 timesteps -> exercises the clamped halo
    # fetch, the tile-0 bias correction and the partial last input/output block.
    out_tiled = jax.block_until_ready(wave_forward(x, params, time_tile=32))
    assert out_tiled.shape == (T, B, hidden_size), out_tiled.shape
    assert jnp.allclose(out_tiled, ref, atol=1e-5, rtol=1e-5), \
        float(jnp.max(jnp.abs(out_tiled - ref)))

    # Default (single-tile at this T) path.
    out_default = jax.block_until_ready(wave_forward(x, params))
    assert jnp.allclose(out_default, ref, atol=1e-5, rtol=1e-5), \
        float(jnp.max(jnp.abs(out_default - ref)))

    # bf16 matmul operands with f32 accumulation (MXU-peak path on v5e/v6e/v7x);
    # looser tolerance because inputs/weights are rounded to bf16.
    out_bf16 = jax.block_until_ready(
        wave_forward(x, params, time_tile=32, compute_dtype=jnp.bfloat16))
    assert jnp.allclose(out_bf16, ref, atol=5e-2, rtol=5e-2), \
        float(jnp.max(jnp.abs(out_bf16 - ref)))

    print("KERNEL_OK")
</pallas_src>

<mosaic_0001>
module attributes {stable_mosaic.version = 11 : i64} {
  func.func @_wave_kernel(%arg0: i32, %arg1: memref<8x32xf32, #tpu.memory_space<vmem>>, %arg2: memref<32x32xf32, #tpu.memory_space<vmem>>, %arg3: memref<256x256xf32, #tpu.memory_space<vmem>>, %arg4: memref<1x256xf32, #tpu.memory_space<vmem>>, %arg5: memref<8x256xf32, #tpu.memory_space<vmem>>, %arg6: memref<32x256xf32, #tpu.memory_space<vmem>>) attributes {dimension_semantics = [#tpu.dimension_semantics<parallel>], iteration_bounds = array<i64: 3>, scalar_prefetch = 0 : i64, scratch_operands = 0 : i64, tpu.core_type = #tpu.core_type<tc>, window_params = [{transform_indices = @transform_0, window_bounds = array<i64: 8, 32>}, {transform_indices = @transform_1, window_bounds = array<i64: 32, 32>}, {pipeline_mode = #tpu.pipeline_mode<synchronous>, transform_indices = @transform_2, window_bounds = array<i64: 256, 256>}, {pipeline_mode = #tpu.pipeline_mode<synchronous>, transform_indices = @transform_3, window_bounds = array<i64: 1, 256>}, {pipeline_mode = #tpu.pipeline_mode<synchronous>, transform_indices = @transform_4, window_bounds = array<i64: 8, 256>}, {transform_indices = @transform_5, window_bounds = array<i64: 32, 256>}]} {
    %c0 = arith.constant 0 : index
    %c0_0 = arith.constant 0 : index
    %0 = vector.load %arg1[%c0, %c0_0] : memref<8x32xf32, #tpu.memory_space<vmem>>, vector<8x32xf32>
    %c0_i32 = arith.constant 0 : i32
    %1 = arith.cmpi eq, %arg0, %c0_i32 : i32
    %cst = arith.constant 0.000000e+00 : f32
    %2 = vector.broadcast %cst : f32 to vector<8x32xf32>
    %3 = arith.select %1, %2, %0 : vector<8x32xf32>
    %c0_1 = arith.constant 0 : index
    %c0_2 = arith.constant 0 : index
    %4 = vector.load %arg2[%c0_1, %c0_2] : memref<32x32xf32, #tpu.memory_space<vmem>>, vector<32x32xf32>
    %5 = tpu.concatenate %3, %4 in 0 : vector<8x32xf32>, vector<32x32xf32> -> vector<40x32xf32>
    %6 = vector.extract_strided_slice %5 {offsets = [8, 0], sizes = [32, 32], strides = [1, 1]} : vector<40x32xf32> to vector<32x32xf32>
    %c0_3 = arith.constant 0 : index
    %c0_4 = arith.constant 0 : index
    %7 = vector.load %arg3[%c0_3, %c0_4] : memref<256x256xf32, #tpu.memory_space<vmem>>, vector<32x256xf32>
    %cst_5 = arith.constant dense<0.000000e+00> : vector<32x256xf32>
    %8 = tpu.matmul %6, %7, %cst_5 {dimension_numbers = #tpu.dot_dimension_numbers<[1], [0], [0], [1], [0, 0, 1, 1], [], []>} : vector<32x32xf32>, vector<32x256xf32>, vector<32x256xf32> -> vector<32x256xf32>
    %c0_6 = arith.constant 0 : index
    %c0_7 = arith.constant 0 : index
    %9 = vector.load %arg4[%c0_6, %c0_7] : memref<1x256xf32, #tpu.memory_space<vmem>>, vector<1x256xf32>
    %10 = vector.broadcast %9 : vector<1x256xf32> to vector<32x256xf32>
    %11 = arith.addf %8, %10 : vector<32x256xf32>
    %12 = vector.extract_strided_slice %5 {offsets = [7, 0], sizes = [32, 32], strides = [1, 1]} : vector<40x32xf32> to vector<32x32xf32>
    %c32 = arith.constant 32 : index
    %c0_8 = arith.constant 0 : index
    %13 = vector.load %arg3[%c32, %c0_8] : memref<256x256xf32, #tpu.memory_space<vmem>>, vector<32x256xf32>
    %cst_9 = arith.constant dense<0.000000e+00> : vector<32x256xf32>
    %14 = tpu.matmul %12, %13, %cst_9 {dimension_numbers = #tpu.dot_dimension_numbers<[1], [0], [0], [1], [0, 0, 1, 1], [], []>} : vector<32x32xf32>, vector<32x256xf32>, vector<32x256xf32> -> vector<32x256xf32>
    %15 = arith.addf %11, %14 : vector<32x256xf32>
    %16 = vector.extract_strided_slice %5 {offsets = [6, 0], sizes = [32, 32], strides = [1, 1]} : vector<40x32xf32> to vector<32x32xf32>
    %c64 = arith.constant 64 : index
    %c0_10 = arith.constant 0 : index
    %17 = vector.load %arg3[%c64, %c0_10] : memref<256x256xf32, #tpu.memory_space<vmem>>, vector<32x256xf32>
    %cst_11 = arith.constant dense<0.000000e+00> : vector<32x256xf32>
    %18 = tpu.matmul %16, %17, %cst_11 {dimension_numbers = #tpu.dot_dimension_numbers<[1], [0], [0], [1], [0, 0, 1, 1], [], []>} : vector<32x32xf32>, vector<32x256xf32>, vector<32x256xf32> -> vector<32x256xf32>
    %19 = arith.addf %15, %18 : vector<32x256xf32>
    %20 = vector.extract_strided_slice %5 {offsets = [5, 0], sizes = [32, 32], strides = [1, 1]} : vector<40x32xf32> to vector<32x32xf32>
    %c96 = arith.constant 96 : index
    %c0_12 = arith.constant 0 : index
    %21 = vector.load %arg3[%c96, %c0_12] : memref<256x256xf32, #tpu.memory_space<vmem>>, vector<32x256xf32>
    %cst_13 = arith.constant dense<0.000000e+00> : vector<32x256xf32>
    %22 = tpu.matmul %20, %21, %cst_13 {dimension_numbers = #tpu.dot_dimension_numbers<[1], [0], [0], [1], [0, 0, 1, 1], [], []>} : vector<32x32xf32>, vector<32x256xf32>, vector<32x256xf32> -> vector<32x256xf32>
    %23 = arith.addf %19, %22 : vector<32x256xf32>
    %24 = vector.extract_strided_slice %5 {offsets = [4, 0], sizes = [32, 32], strides = [1, 1]} : vector<40x32xf32> to vector<32x32xf32>
    %c128 = arith.constant 128 : index
    %c0_14 = arith.constant 0 : index
    %25 = vector.load %arg3[%c128, %c0_14] : memref<256x256xf32, #tpu.memory_space<vmem>>, vector<32x256xf32>
    %cst_15 = arith.constant dense<0.000000e+00> : vector<32x256xf32>
    %26 = tpu.matmul %24, %25, %cst_15 {dimension_numbers = #tpu.dot_dimension_numbers<[1], [0], [0], [1], [0, 0, 1, 1], [], []>} : vector<32x32xf32>, vector<32x256xf32>, vector<32x256xf32> -> vector<32x256xf32>
    %27 = arith.addf %23, %26 : vector<32x256xf32>
    %28 = vector.extract_strided_slice %5 {offsets = [3, 0], sizes = [32, 32], strides = [1, 1]} : vector<40x32xf32> to vector<32x32xf32>
    %c160 = arith.constant 160 : index
    %c0_16 = arith.constant 0 : index
    %29 = vector.load %arg3[%c160, %c0_16] : memref<256x256xf32, #tpu.memory_space<vmem>>, vector<32x256xf32>
    %cst_17 = arith.constant dense<0.000000e+00> : vector<32x256xf32>
    %30 = tpu.matmul %28, %29, %cst_17 {dimension_numbers = #tpu.dot_dimension_numbers<[1], [0], [0], [1], [0, 0, 1, 1], [], []>} : vector<32x32xf32>, vector<32x256xf32>, vector<32x256xf32> -> vector<32x256xf32>
    %31 = arith.addf %27, %30 : vector<32x256xf32>
    %32 = vector.extract_strided_slice %5 {offsets = [2, 0], sizes = [32, 32], strides = [1, 1]} : vector<40x32xf32> to vector<32x32xf32>
    %c192 = arith.constant 192 : index
    %c0_18 = arith.constant 0 : index
    %33 = vector.load %arg3[%c192, %c0_18] : memref<256x256xf32, #tpu.memory_space<vmem>>, vector<32x256xf32>
    %cst_19 = arith.constant dense<0.000000e+00> : vector<32x256xf32>
    %34 = tpu.matmul %32, %33, %cst_19 {dimension_numbers = #tpu.dot_dimension_numbers<[1], [0], [0], [1], [0, 0, 1, 1], [], []>} : vector<32x32xf32>, vector<32x256xf32>, vector<32x256xf32> -> vector<32x256xf32>
    %35 = arith.addf %31, %34 : vector<32x256xf32>
    %36 = vector.extract_strided_slice %5 {offsets = [1, 0], sizes = [32, 32], strides = [1, 1]} : vector<40x32xf32> to vector<32x32xf32>
    %c224 = arith.constant 224 : index
    %c0_20 = arith.constant 0 : index
    %37 = vector.load %arg3[%c224, %c0_20] : memref<256x256xf32, #tpu.memory_space<vmem>>, vector<32x256xf32>
    %cst_21 = arith.constant dense<0.000000e+00> : vector<32x256xf32>
    %38 = tpu.matmul %36, %37, %cst_21 {dimension_numbers = #tpu.dot_dimension_numbers<[1], [0], [0], [1], [0, 0, 1, 1], [], []>} : vector<32x32xf32>, vector<32x256xf32>, vector<32x256xf32> -> vector<32x256xf32>
    %39 = arith.addf %35, %38 : vector<32x256xf32>
    %c0_22 = arith.constant 0 : index
    %c0_23 = arith.constant 0 : index
    %40 = vector.load %arg6[%c0_22, %c0_23] : memref<32x256xf32, #tpu.memory_space<vmem>>, vector<32x256xf32>
    tpu.vector_store %arg6[%c0_22, %c0_23], %39 {strides = array<i32>} : memref<32x256xf32, #tpu.memory_space<vmem>>, vector<32x256xf32>,
    %c0_i32_24 = arith.constant 0 : i32
    %41 = arith.cmpi eq, %arg0, %c0_i32_24 : i32
    %42 = arith.extui %41 : i1 to i32
    %c0_i32_25 = arith.constant 0 : i32
    %43 = arith.cmpi ne, %42, %c0_i32_25 : i32
    scf.if %43 {
      %44 = vector.extract_strided_slice %39 {offsets = [0, 0], sizes = [8, 256], strides = [1, 1]} : vector<32x256xf32> to vector<8x256xf32>
      %c0_26 = arith.constant 0 : index
      %c0_27 = arith.constant 0 : index
      %45 = vector.load %arg5[%c0_26, %c0_27] : memref<8x256xf32, #tpu.memory_space<vmem>>, vector<8x256xf32>
      %46 = arith.addf %44, %45 : vector<8x256xf32>
      %c0_28 = arith.constant 0 : index
      %c0_29 = arith.constant 0 : index
      %47 = vector.load %arg6[%c0_28, %c0_29] : memref<32x256xf32, #tpu.memory_space<vmem>>, vector<8x256xf32>
      tpu.vector_store %arg6[%c0_28, %c0_29], %46 {strides = array<i32>} : memref<32x256xf32, #tpu.memory_space<vmem>>, vector<8x256xf32>,
    } else {
    }
    return
  }
  func.func @transform_0(%arg0: i32) -> (i32, i32) {
    %c4_i32 = arith.constant 4 : i32
    %0 = arith.muli %arg0, %c4_i32 : i32
    %c1_i32 = arith.constant 1 : i32
    %1 = arith.subi %0, %c1_i32 : i32
    %c0_i32 = arith.constant 0 : i32
    %2 = arith.maxsi %1, %c0_i32 : i32
    %c0_i32_0 = arith.constant 0 : i32
    %c0_i32_1 = arith.constant 0 : i32
    return %2, %c0_i32_0 : i32, i32
  }
  func.func @transform_1(%arg0: i32) -> (i32, i32) {
    %c0_i32 = arith.constant 0 : i32
    %c0_i32_0 = arith.constant 0 : i32
    return %arg0, %c0_i32 : i32, i32
  }
  func.func @transform_2(%arg0: i32) -> (i32, i32) {
    %c0_i32 = arith.constant 0 : i32
    %c0_i32_0 = arith.constant 0 : i32
    %c0_i32_1 = arith.constant 0 : i32
    return %c0_i32, %c0_i32_0 : i32, i32
  }
  func.func @transform_3(%arg0: i32) -> (i32, i32) {
    %c0_i32 = arith.constant 0 : i32
    %c0_i32_0 = arith.constant 0 : i32
    %c0_i32_1 = arith.constant 0 : i32
    return %c0_i32, %c0_i32_0 : i32, i32
  }
  func.func @transform_4(%arg0: i32) -> (i32, i32) {
    %c0_i32 = arith.constant 0 : i32
    %c0_i32_0 = arith.constant 0 : i32
    %c0_i32_1 = arith.constant 0 : i32
    return %c0_i32, %c0_i32_0 : i32, i32
  }
  func.func @transform_5(%arg0: i32) -> (i32, i32) {
    %c0_i32 = arith.constant 0 : i32
    %c0_i32_0 = arith.constant 0 : i32
    return %arg0, %c0_i32 : i32, i32
  }
}

</mosaic_0001>

<llo_original>
// kernel: tpu_custom_call.1
$region0: #{tpu_custom_call.1}
  #allocation0 [shape = 'u32[]', space=smem, size = 0x4, offset = 0x4, fixed_abs, tag = 'smem constant byte address 0x4 - core index']
  #allocation1 [shape = 'u32[144,128]{1,0:T(1,128)}', space=vmem, size = 0x12000, scoped, tag = 'internal scratch']
  %s0 = inlined_call_operand.vmem [shape: f32[80,32], index: 0, kind: input, shape index: {}]
  %s1 = inlined_call_operand.vmem [shape: f32[80,32], index: 1, kind: input, shape index: {}]
  %s2 = inlined_call_operand.hbm [shape: f32[256,256], index: 2, kind: input, shape index: {}]
  %s3 = inlined_call_operand.vmem [shape: f32[1,256], index: 3, kind: input, shape index: {}]
  %s4 = inlined_call_operand.vmem [shape: f32[8,256], index: 4, kind: input, shape index: {}]
  %s5 = inlined_call_operand.hbm [shape: f32[80,256], index: 5, kind: output, shape index: {}]
  %s6 = sld [smem:[#allocation0]]
  $region61: #{tpu_custom_call.1} parent=0
    _
  %s8 = ssub.s32 1, %s6
  %s9 = scalar_select 0, %s8, %s6
  $region1: #{tpu_custom_call.1} parent=0
    #allocation2 [shape = 'u8[262144]{0}', space=vmem, size = 0x40000, scoped, tag = 'input window, operand 2, single buffered']
    #allocation3 [shape = 's32[2]{0}', space=sflag, size = 0x8, scoped, tag = 'scoped memory for tpu_custom_call.1']
    #allocation4 [shape = 's32[2]{0}', space=sflag, size = 0x8, scoped, tag = 'scoped memory for tpu_custom_call.1']
    #allocation5 [shape = 'u8[65536]{0}', space=vmem, size = 0x10000, scoped, tag = 'output window, operand 0']
    %10 = vsyncpa [#allocation3], 0
    %11 = vsyncpa [#allocation4], 0
    %s12 = scalar_lea.sflag [#allocation4], 1
    %13 = vsyncpa %s12, 0
    loop: start=0, step=1, limit=5
    $region2: #{tpu_custom_call.1} parent=1 // loop_pre_header
      _
    $region3: #{tpu_custom_call.1} parent=1 // loop_header
      %s15 = sphi 0, %s19
      %p16 = scmp.ge.s32.totalorder %s15, 5
      %s33 = sphi 0, %s35
      %s36 = sphi 0, %s33
      %s37 = sphi 0, %s36
      %s53 = sphi 0, %s37
      %s59 = sphi 0, %s61
      %s62 = sphi 0, %s59
      %s63 = sphi 0, %s62
      %s79 = sphi 0, %s63
      %s83 = sphi 0, %s83
      %s85 = sphi 0, %s83
      %s86 = sphi 0, %s85
      %s100 = sphi 0, %s86
      %s104 = sphi 0, %s104
      %s106 = sphi 0, %s104
      %s107 = sphi 0, %s106
      %s121 = sphi 0, %s107
      %s125 = sphi 0, %s125
      %s127 = sphi 0, %s125
      %s128 = sphi 0, %s127
      %s142 = sphi 0, %s128
      %s148 = sphi 0, %s150
      %s151 = sphi 0, %s148
      %s152 = sphi 0, %s151
      %s168 = sphi 0, %s152
    $region4: #{tpu_custom_call.1} parent=1 // loop_header_branch
      %18 = sbr.rel (%p16) target = $region8
    $region5: #{tpu_custom_call.1} parent=1 // loop_body
      %s20 = ssub.s32 %s15, 1
      %s21 = ssub.s32 %s15, 2
      %s22 = sadd.s32 %s15, 1
      %s23 = smul.u32 %s15, 4
      %s24 = ssub.s32 %s23, 1
      %p25 = scmp.gt.s32.totalorder %s24, 0
      %s26 = scalar_select %p25, %s24, 0
      %s27 = smul.u32 %s22, 4
      %s28 = ssub.s32 %s27, 1
      %p29 = scmp.gt.s32.totalorder %s28, 0
      %s30 = scalar_select %p29, %s28, 0
      %s31 = ssub.s32 %s26, %s30
      %p32 = scmp.eq.s32.totalorder %s31, 0
      %s34 = sadd.s32 %s33, 1
      %s35 = scalar_select %p32, %s33, %s34
      %p38 = pneg %p32
      %p39 = scmp.eq.s32.totalorder %s15, 2
      %p40 = por %p38, %p39
      %p41 = scmp.ne.s32.totalorder %s33, %s36
      %p42 = scmp.eq.s32.totalorder %s15, 0
      %p43 = por %p41, %p42
      %p44 = scmp.ne.s32.totalorder %s33, %s36
      %p45 = scmp.eq.s32.totalorder %s20, 2
      %p46 = por %p44, %p45
      %p47 = scmp.ne.s32.totalorder %s36, %s37
      %p48 = scmp.eq.s32.totalorder %s20, 0
      %p49 = por %p47, %p48
      %p50 = scmp.ne.s32.totalorder %s36, %s37
      %p51 = scmp.eq.s32.totalorder %s21, 2
      %p52 = por %p50, %p51
      %p54 = scmp.ne.s32.totalorder %s37, %s53
      %p55 = scmp.eq.s32.totalorder %s21, 0
      %p56 = por %p54, %p55
      %s57 = ssub.s32 %s15, %s22
      %p58 = scmp.eq.s32.totalorder %s57, 0
      %s60 = sadd.s32 %s59, 1
      %s61 = scalar_select %p58, %s59, %s60
      %p64 = pneg %p58
      %p65 = scmp.eq.s32.totalorder %s15, 2
      %p66 = por %p64, %p65
      %p67 = scmp.ne.s32.totalorder %s59, %s62
      %p68 = scmp.eq.s32.totalorder %s15, 0
      %p69 = por %p67, %p68
      %p70 = scmp.ne.s32.totalorder %s59, %s62
      %p71 = scmp.eq.s32.totalorder %s20, 2
      %p72 = por %p70, %p71
      %p73 = scmp.ne.s32.totalorder %s62, %s63
      %p74 = scmp.eq.s32.totalorder %s20, 0
      %p75 = por %p73, %p74
      %p76 = scmp.ne.s32.totalorder %s62, %s63
      %p77 = scmp.eq.s32.totalorder %s21, 2
      %p78 = por %p76, %p77
      %p80 = scmp.ne.s32.totalorder %s63, %s79
      %p81 = scmp.eq.s32.totalorder %s21, 0
      %p82 = por %p80, %p81
      %s84 = sadd.s32 %s83, 1
      %p87 = scmp.eq.s32.totalorder %s15, 2
      %p88 = scmp.ne.s32.totalorder %s83, %s85
      %p89 = scmp.eq.s32.totalorder %s15, 0
      %p90 = por %p88, %p89
      %p91 = scmp.ne.s32.totalorder %s83, %s85
      %p92 = scmp.eq.s32.totalorder %s20, 2
      %p93 = por %p91, %p92
      %p94 = scmp.ne.s32.totalorder %s85, %s86
      %p95 = scmp.eq.s32.totalorder %s20, 0
      %p96 = por %p94, %p95
      %p97 = scmp.ne.s32.totalorder %s85, %s86
      %p98 = scmp.eq.s32.totalorder %s21, 2
      %p99 = por %p97, %p98
      %p101 = scmp.ne.s32.totalorder %s86, %s100
      %p102 = scmp.eq.s32.totalorder %s21, 0
      %p103 = por %p101, %p102
      %s105 = sadd.s32 %s104, 1
      %p108 = scmp.eq.s32.totalorder %s15, 2
      %p109 = scmp.ne.s32.totalorder %s104, %s106
      %p110 = scmp.eq.s32.totalorder %s15, 0
      %p111 = por %p109, %p110
      %p112 = scmp.ne.s32.totalorder %s104, %s106
      %p113 = scmp.eq.s32.totalorder %s20, 2
      %p114 = por %p112, %p113
      %p115 = scmp.ne.s32.totalorder %s106, %s107
      %p116 = scmp.eq.s32.totalorder %s20, 0
      %p117 = por %p115, %p116
      %p118 = scmp.ne.s32.totalorder %s106, %s107
      %p119 = scmp.eq.s32.totalorder %s21, 2
      %p120 = por %p118, %p119
      %p122 = scmp.ne.s32.totalorder %s107, %s121
      %p123 = scmp.eq.s32.totalorder %s21, 0
      %p124 = por %p122, %p123
      %s126 = sadd.s32 %s125, 1
      %p129 = scmp.eq.s32.totalorder %s15, 2
      %p130 = scmp.ne.s32.totalorder %s125, %s127
      %p131 = scmp.eq.s32.totalorder %s15, 0
      %p132 = por %p130, %p131
      %p133 = scmp.ne.s32.totalorder %s125, %s127
      %p134 = scmp.eq.s32.totalorder %s20, 2
      %p135 = por %p133, %p134
      %p136 = scmp.ne.s32.totalorder %s127, %s128
      %p137 = scmp.eq.s32.totalorder %s20, 0
      %p138 = por %p136, %p137
      %p139 = scmp.ne.s32.totalorder %s127, %s128
      %p140 = scmp.eq.s32.totalorder %s21, 2
      %p141 = por %p139, %p140
      %p143 = scmp.ne.s32.totalorder %s128, %s142
      %p144 = scmp.eq.s32.totalorder %s21, 0
      %p145 = por %p143, %p144
      %s146 = ssub.s32 %s15, %s22
      %p147 = scmp.eq.s32.totalorder %s146, 0
      %s149 = sadd.s32 %s148, 1
      %s150 = scalar_select %p147, %s148, %s149
      %p153 = pneg %p147
      %p154 = scmp.eq.s32.totalorder %s15, 2
      %p155 = por %p153, %p154
      %p156 = scmp.ne.s32.totalorder %s148, %s151
      %p157 = scmp.eq.s32.totalorder %s15, 0
      %p158 = por %p156, %p157
      %p159 = scmp.ne.s32.totalorder %s148, %s151
      %p160 = scmp.eq.s32.totalorder %s20, 2
      %p161 = por %p159, %p160
      %p162 = scmp.ne.s32.totalorder %s151, %s152
      %p163 = scmp.eq.s32.totalorder %s20, 0
      %p164 = por %p162, %p163
      %p165 = scmp.ne.s32.totalorder %s151, %s152
      %p166 = scmp.eq.s32.totalorder %s21, 2
      %p167 = por %p165, %p166
      %p169 = scmp.ne.s32.totalorder %s152, %s168
      %p170 = scmp.eq.s32.totalorder %s21, 0
      %p171 = por %p169, %p170
      %p172 = scmp.le.s32.totalorder 1, %s15
      %p173 = scmp.lt.s32.totalorder %s15, 4
      %p174 = pnand %p172, %p173
      %p175 = pneg %p174
      // Predicated region
      $region9: #{tpu_custom_call.1} parent=5 // pred_check
        _
      $region10: #{tpu_custom_call.1} parent=5 // pred_check_branch
        %177 = sbr.rel (%p174) target = $region12
      $region11: #{tpu_custom_call.1} parent=5 // pred_region
        %s178 = ssub.s32 %s15, 1
        // Predicated region
        $region13: #{tpu_custom_call.1} parent=11 // pred_check
          %p179 = pneg %p96
        $region14: #{tpu_custom_call.1} parent=11 // pred_check_branch
          %181 = sbr.rel (%p179) target = $region16
        $region15: #{tpu_custom_call.1} parent=11 // pred_region
          %s183 = ssub.s32 8192, 8192
          %184 = vsyncadd [#allocation3], %s183
          %s185 = sshll.u32 [#allocation2], 4
          %s186 = int_to_ptr.vmem [resolvable:$true] %s185
          %191 = dma.hbm_to_vmem [thread:$0]  %s2, 8192, %s186, [#allocation3], 256, 256, 16
        $region16: #{tpu_custom_call.1} parent=11 // pred_fallthru
          _
        // Predicated region
        $region17: #{tpu_custom_call.1} parent=11 // pred_check
          %p192 = pneg %p117
        $region18: #{tpu_custom_call.1} parent=11 // pred_check_branch
          %194 = sbr.rel (%p192) target = $region20
        $region19: #{tpu_custom_call.1} parent=11 // pred_region
          _
        $region20: #{tpu_custom_call.1} parent=11 // pred_fallthru
          _
        // Predicated region
        $region21: #{tpu_custom_call.1} parent=11 // pred_check
          %p195 = pneg %p138
        $region22: #{tpu_custom_call.1} parent=11 // pred_check_branch
          %197 = sbr.rel (%p195) target = $region24
        $region23: #{tpu_custom_call.1} parent=11 // pred_region
          _
        $region24: #{tpu_custom_call.1} parent=11 // pred_fallthru
          _
      $region12: #{tpu_custom_call.1} parent=5 // pred_fallthru
        _
      %p198 = scmp.lt.s32.totalorder %s15, 3
      // Predicated region
      $region25: #{tpu_custom_call.1} parent=5 // pred_check
        %p199 = pneg %p198
      $region26: #{tpu_custom_call.1} parent=5 // pred_check_branch
        %201 = sbr.rel (%p199) target = $region28
      $region27: #{tpu_custom_call.1} parent=5 // pred_region
        // Predicated region
        $region29: #{tpu_custom_call.1} parent=27 // pred_check
          %p202 = pneg %p43
        $region30: #{tpu_custom_call.1} parent=27 // pred_check_branch
          %204 = sbr.rel (%p202) target = $region32
        $region31: #{tpu_custom_call.1} parent=27 // pred_region
          %s205 = smul.u32 %s15, 4
          %s206 = ssub.s32 %s205, 1
          %p207 = scmp.gt.s32.totalorder %s206, 0
          %s208 = scalar_select %p207, %s206, 0
          %p209 = scmp.lt.s32.totalorder %s208, 9
          %s210 = scalar_select %p209, %s208, 9
          %s211 = smul.addr %s210, 8
          %s212 = scalar_lea.vmem %s0, %s211
          %s213 = smul.u32 %s15, 4
          %s214 = ssub.s32 %s213, 1
          %p215 = scmp.gt.s32.totalorder %s214, 0
          %s216 = scalar_select %p215, %s214, 0
        $region32: #{tpu_custom_call.1} parent=27 // pred_fallthru
          _
        // Predicated region
        $region33: #{tpu_custom_call.1} parent=27 // pred_check
          %p217 = pneg %p69
        $region34: #{tpu_custom_call.1} parent=27 // pred_check_branch
          %219 = sbr.rel (%p217) target = $region36
        $region35: #{tpu_custom_call.1} parent=27 // pred_region
          %s220 = smul.u32 4, %s15
          %s221 = ssub.s32 10, %s220
          %p222 = scmp.lt.s32.totalorder %s221, 4
          %s223 = scalar_select %p222, %s221, 4
          %s224 = smul.u32 128, %s223
          %p225 = scmp.lt.s32.totalorder %s220, 9
          %s226 = scalar_select %p225, %s220, 9
          %s227 = smul.addr %s226, 8
          %s228 = scalar_lea.vmem %s1, %s227
          %s229 = smul.u32 4, %s15
          %s230 = ssub.s32 10, %s229
          %p231 = scmp.lt.s32.totalorder %s230, 4
          %s232 = scalar_select %p231, %s230, 4
          %s233 = smul.u32 128, %s232
        $region36: #{tpu_custom_call.1} parent=27 // pred_fallthru
          _
      $region28: #{tpu_custom_call.1} parent=5 // pred_fallthru
        _
      %p234 = scmp.le.s32.totalorder 1, %s15
      %p235 = scmp.lt.s32.totalorder %s15, 4
      %p236 = pnand %p234, %p235
      %p237 = pneg %p236
      // Predicated region
      $region37: #{tpu_custom_call.1} parent=5 // pred_check
        _
      $region38: #{tpu_custom_call.1} parent=5 // pred_check_branch
        %239 = sbr.rel (%p236) target = $region40
      $region39: #{tpu_custom_call.1} parent=5 // pred_region
        %s240 = ssub.s32 %s15, 1
        // Predicated region
        $region41: #{tpu_custom_call.1} parent=39 // pred_check
          %p241 = pneg %p96
        $region42: #{tpu_custom_call.1} parent=39 // pred_check_branch
          %243 = sbr.rel (%p241) target = $region44
        $region43: #{tpu_custom_call.1} parent=39 // pred_region
          %244 = dma.done [#allocation3], 8192
        $region44: #{tpu_custom_call.1} parent=39 // pred_fallthru
          _
        %s245 = smul.u32 %s20, 4
        %s246 = ssub.s32 %s245, 1
        %p247 = scmp.gt.s32.totalorder %s246, 0
        %s248 = scalar_select %p247, %s246, 0
        %p249 = scmp.lt.s32.totalorder %s248, 9
        %s250 = scalar_select %p249, %s248, 9
        %s251 = smul.addr %s250, 8
        %s252 = scalar_lea.vmem %s0, %s251
        %p253 = pneg %p49
        %p254 = pneg %p46
        %s255 = smul.u32 4, %s20
        %s256 = ssub.s32 10, %s255
        %p257 = scmp.lt.s32.totalorder %s256, 4
        %s258 = scalar_select %p257, %s256, 4
        %s259 = smul.u32 128, %s258
        %p260 = scmp.lt.s32.totalorder %s255, 9
        %s261 = scalar_select %p260, %s255, 9
        %s262 = smul.addr %s261, 8
        %s263 = scalar_lea.vmem %s1, %s262
        %p264 = pneg %p75
        %p265 = pneg %p72
        %p266 = pneg %p96
        %p267 = pneg %p93
        %p268 = pneg %p117
        %p269 = pneg %p114
        %p270 = pneg %p138
        %p271 = pneg %p135
        %p272 = pneg %p164
        %p273 = pneg %p161
        %s274 = sand.u32 %s151, 1
        %s275 = scalar_lea.sflag [#allocation4], %s274
        %s276 = sand.u32 %s151, 1
        %s277 = smul.addr %s276, 64
        %s278 = scalar_lea.vmem [#allocation5], %s277
        %s279 = smul.u32 %s20, 4
        %s280 = ssub.s32 %s279, 1
        %p281 = scmp.gt.s32.totalorder %s280, 0
        %s282 = scalar_select %p281, %s280, 0
        %p283 = scmp.lt.s32.totalorder %s282, 9
        %s284 = scalar_select %p283, %s282, 9
        %s285 = smul.addr %s284, 8
        %s286 = scalar_lea.vmem %s0, %s285
        %s287 = smul.u32 %s20, 4
        %s288 = ssub.s32 %s287, 1
        %p289 = scmp.gt.s32.totalorder %s288, 0
        %s290 = scalar_select %p289, %s288, 0
        %s291 = smul.u32 4, %s20
        %s292 = ssub.s32 10, %s291
        %p293 = scmp.lt.s32.totalorder %s292, 4
        %s294 = scalar_select %p293, %s292, 4
        %s295 = smul.u32 128, %s294
        %p296 = scmp.lt.s32.totalorder %s291, 9
        %s297 = scalar_select %p296, %s291, 9
        %s298 = smul.addr %s297, 8
        %s299 = scalar_lea.vmem %s1, %s298
        %s300 = smul.u32 4, %s20
        %s301 = ssub.s32 10, %s300
        %p302 = scmp.lt.s32.totalorder %s301, 4
        %s303 = scalar_select %p302, %s301, 4
        %s304 = smul.u32 128, %s303
        %s305 = smul.u32 4, %s20
        %s306 = ssub.s32 10, %s305
        %p307 = scmp.lt.s32.totalorder %s306, 4
        %s308 = scalar_select %p307, %s306, 4
        %s309 = smul.u32 128, %s308
        %s310 = smul.u32 %s309, 2
        %v311 = vld [vmem:[%s286] sm:$0xff]
        %p312 = scmp.eq.s32.totalorder %s20, 0
        %s313 = scalar_select %p312, 1, 0
        %v314 = vstv %s313
        %vm315 = vcmp.eq.s32.totalorder %v314, 1
        %v316 = vsel %vm315, 0.0, %v311
        %v317 = vld [vmem:[%s299] sm:$0xff]
        %v318 = vld [vmem:[%s299 + $0x8] sm:$0xff]
        %v319 = vld [vmem:[%s299 + $0x10] sm:$0xff]
        %v320 = vld [vmem:[%s299 + $0x18] sm:$0xff]
        %v321 = vld [vmem:[#allocation2] sm:$0xff]
        %v322 = vld [vmem:[#allocation2 + $0x8] sm:$0xff]
        %v323 = vld [vmem:[#allocation2 + $0x10] sm:$0xff]
        %v324 = vld [vmem:[#allocation2 + $0x18] sm:$0xff]
        %v325 = vld [vmem:[#allocation2 + $0x20] sm:$0xff]
        %v326 = vld [vmem:[#allocation2 + $0x28] sm:$0xff]
        %v327 = vld [vmem:[#allocation2 + $0x30] sm:$0xff]
        %v328 = vld [vmem:[#allocation2 + $0x38] sm:$0xff]
        %v329 = vld [vmem:[%s3] sm:$0x3]
        %v331 = vlaneseq
        %v332 = vshrl.u32 %v331, 7
        %v333 = vsub.s32 0, %v332
        %v334 = vrot.slane %v329, %v333
        %v335 = vlaneseq
        %v336 = vshrl.u32 %v335, 7
        %v337 = vsub.s32 1, %v336
        %v338 = vrot.slane %v329, %v337
        %vm341 = vcmask 261120
        %v343 = vsel %vm341, %v317, 0
        %v346 = vsel %vm341, %v318, 0
        %v349 = vsel %vm341, %v319, 0
        %v352 = vsel %vm341, %v320, 0
        %354 = vmatprep.subr.mxu0 %v322
        %355 = vmatpush1.msra.mxu0 %v321
        %356 = vmatprep.subr.mxu0 %v324
        %357 = vmatpush1.msra.mxu0 %v323
        %358 = vmatprep.subr.mxu0 %v326
        %359 = vmatpush1.msra.mxu0 %v325
        %360 = vmatprep.subr.mxu0 %v328
        %361 = vmatpush1.msra.mxu0 %v327
        %362 = vmatprep.subr.mxu0 0.0
        %363 = vmatpush1.msra.mxu0 0.0
        %364 = vmatprep.subr.mxu0 0.0
        %365 = vmatpush1.msra.mxu0 0.0
        %366 = vmatprep.subr.mxu0 0.0
        %367 = vmatpush1.msra.mxu0 0.0
        %368 = vmatprep.subr.mxu0 0.0
        %369 = vmatpush1.msra.mxu0 0.0
        %370 = vmatprep.subr.mxu0 0.0
        %371 = vmatpush1.msra.mxu0 0.0
        %372 = vmatprep.subr.mxu0 0.0
        %373 = vmatpush1.msra.mxu0 0.0
        %374 = vmatprep.subr.mxu0 0.0
        %375 = vmatpush1.msra.mxu0 0.0
        %376 = vmatprep.subr.mxu0 0.0
        %377 = vmatpush1.msra.mxu0 0.0
        %378 = vmatprep.subr.mxu0 0.0
        %379 = vmatpush1.msra.mxu0 0.0
        %380 = vmatprep.subr.mxu0 0.0
        %381 = vmatpush1.msra.mxu0 0.0
        %382 = vmatprep.subr.mxu0 0.0
        %383 = vmatpush1.msra.mxu0 0.0
        %384 = vmatprep.subr.mxu0 0.0
        %385 = vmatpush1.msra.mxu0 0.0
        %386 = vmatprep.subr.mxu0 0.0
        %387 = vmatpush1.msra.mxu0 0.0
        %388 = vmatprep.subr.mxu0 0.0
        %389 = vmatpush1.msra.mxu0 0.0
        %390 = vmatprep.subr.mxu0 0.0
        %391 = vmatpush1.msra.mxu0 0.0
        %392 = vmatprep.subr.mxu0 0.0
        %393 = vmatpush1.msra.mxu0 0.0
        %394 = vmatprep.subr.mxu0 0.0
        %395 = vmatpush1.msra.mxu0 0.0
        %396 = vmatprep.subr.mxu0 0.0
        %397 = vmatpush1.msra.mxu0 0.0
        %398 = vmatprep.subr.mxu0 0.0
        %399 = vmatpush1.msra.mxu0 0.0
        %400 = vmatprep.subr.mxu0 0.0
        %401 = vmatpush1.msra.mxu0 0.0
        %402 = vmatprep.subr.mxu0 0.0
        %403 = vmatpush1.msra.mxu0 0.0
        %404 = vmatprep.subr.mxu0 0.0
        %405 = vmatpush1.msra.mxu0 0.0
        %406 = vmatprep.subr.mxu0 0.0
        %407 = vmatpush1.msra.mxu0 0.0
        %408 = vmatprep.subr.mxu0 0.0
        %409 = vmatpush1.msra.mxu0 0.0
        %410 = vmatprep.subr.mxu0 0.0
        %411 = vmatpush1.msra.mxu0 0.0
        %412 = vmatprep.subr.mxu0 0.0
        %413 = vmatpush1.msra.mxu0 0.0
        %414 = vmatprep.subr.mxu0 0.0
        %415 = vmatpush1.msra.mxu0 0.0
        %416 = vmatprep.subr.mxu0 0.0
        %417 = vmatpush1.msra.mxu0 0.0
        %418 = vmatprep.mubr.f32.mxu0 0.0
        %419 = vmatmul.mubr.f32.gmra.mrb[0].mxu0 %v343
        %v420 = vpop.f32.mrb[0].mxu0
        %v421 = vadd.f32 %v334, %v420
        %v422 = vpop.f32.mrb[0].mxu0
        %v423 = vadd.f32 %v338, %v422
        %424 = vmatprep.mubr.f32.mxu0 0.0
        %425 = vmatmul.mubr.f32.gmra.mrb[0].mxu0 %v346
        %v426 = vpop.f32.mrb[0].mxu0
        %v427 = vadd.f32 %v334, %v426
        %v428 = vpop.f32.mrb[0].mxu0
        %v429 = vadd.f32 %v338, %v428
        %430 = vmatprep.mubr.f32.mxu0 0.0
        %431 = vmatmul.mubr.f32.gmra.mrb[0].mxu0 %v349
        %v432 = vpop.f32.mrb[0].mxu0
        %v433 = vadd.f32 %v334, %v432
        %v434 = vpop.f32.mrb[0].mxu0
        %v435 = vadd.f32 %v338, %v434
        %436 = vmatprep.mubr.f32.mxu0 0.0
        %437 = vmatmul.mubr.f32.gmra.mrb[0].mxu0 %v352
        %v438 = vpop.f32.mrb[0].mxu0
        %v439 = vadd.f32 %v334, %v438
        %v440 = vpop.f32.mrb[0].mxu0
        %v441 = vadd.f32 %v338, %v440
        %442 = vdwg.mxu0
        %v443 = vld [vmem:[#allocation2 + $0x40] sm:$0xff]
        %v444 = vld [vmem:[#allocation2 + $0x48] sm:$0xff]
        %v445 = vld [vmem:[#allocation2 + $0x50] sm:$0xff]
        %v446 = vld [vmem:[#allocation2 + $0x58] sm:$0xff]
        %v447 = vld [vmem:[#allocation2 + $0x60] sm:$0xff]
        %v448 = vld [vmem:[#allocation2 + $0x68] sm:$0xff]
        %v449 = vld [vmem:[#allocation2 + $0x70] sm:$0xff]
        %v450 = vld [vmem:[#allocation2 + $0x78] sm:$0xff]
        %vm452 = vcmask 1040384
        %v453 = vrot.slane %v316, 7
        %v454 = vrot.slane %v317, 7
        %v455 = vsel %vm452, %v453, %v454
        %v456 = vrot.slane %v318, 7
        %v457 = vsel %vm452, %v454, %v456
        %v458 = vrot.slane %v319, 7
        %v459 = vsel %vm452, %v456, %v458
        %v460 = vrot.slane %v320, 7
        %v461 = vsel %vm452, %v458, %v460
        %v462 = vsel %vm341, %v455, 0
        %v464 = vsel %vm341, %v457, 0
        %v466 = vsel %vm341, %v459, 0
        %v468 = vsel %vm341, %v461, 0
        %470 = vmatprep.subr.mxu0 %v444
        %471 = vmatpush1.msra.mxu0 %v443
        %472 = vmatprep.subr.mxu0 %v446
        %473 = vmatpush1.msra.mxu0 %v445
        %474 = vmatprep.subr.mxu0 %v448
        %475 = vmatpush1.msra.mxu0 %v447
        %476 = vmatprep.subr.mxu0 %v450
        %477 = vmatpush1.msra.mxu0 %v449
        %478 = vmatprep.subr.mxu0 0.0
        %479 = vmatpush1.msra.mxu0 0.0
        %480 = vmatprep.subr.mxu0 0.0
        %481 = vmatpush1.msra.mxu0 0.0
        %482 = vmatprep.subr.mxu0 0.0
        %483 = vmatpush1.msra.mxu0 0.0
        %484 = vmatprep.subr.mxu0 0.0
        %485 = vmatpush1.msra.mxu0 0.0
        %486 = vmatprep.subr.mxu0 0.0
        %487 = vmatpush1.msra.mxu0 0.0
        %488 = vmatprep.subr.mxu0 0.0
        %489 = vmatpush1.msra.mxu0 0.0
        %490 = vmatprep.subr.mxu0 0.0
        %491 = vmatpush1.msra.mxu0 0.0
        %492 = vmatprep.subr.mxu0 0.0
        %493 = vmatpush1.msra.mxu0 0.0
        %494 = vmatprep.subr.mxu0 0.0
        %495 = vmatpush1.msra.mxu0 0.0
        %496 = vmatprep.subr.mxu0 0.0
        %497 = vmatpush1.msra.mxu0 0.0
        %498 = vmatprep.subr.mxu0 0.0
        %499 = vmatpush1.msra.mxu0 0.0
        %500 = vmatprep.subr.mxu0 0.0
        %501 = vmatpush1.msra.mxu0 0.0
        %502 = vmatprep.subr.mxu0 0.0
        %503 = vmatpush1.msra.mxu0 0.0
        %504 = vmatprep.subr.mxu0 0.0
        %505 = vmatpush1.msra.mxu0 0.0
        %506 = vmatprep.subr.mxu0 0.0
        %507 = vmatpush1.msra.mxu0 0.0
        %508 = vmatprep.subr.mxu0 0.0
        %509 = vmatpush1.msra.mxu0 0.0
        %510 = vmatprep.subr.mxu0 0.0
        %511 = vmatpush1.msra.mxu0 0.0
        %512 = vmatprep.subr.mxu0 0.0
        %513 = vmatpush1.msra.mxu0 0.0
        %514 = vmatprep.subr.mxu0 0.0
        %515 = vmatpush1.msra.mxu0 0.0
        %516 = vmatprep.subr.mxu0 0.0
        %517 = vmatpush1.msra.mxu0 0.0
        %518 = vmatprep.subr.mxu0 0.0
        %519 = vmatpush1.msra.mxu0 0.0
        %520 = vmatprep.subr.mxu0 0.0
        %521 = vmatpush1.msra.mxu0 0.0
        %522 = vmatprep.subr.mxu0 0.0
        %523 = vmatpush1.msra.mxu0 0.0
        %524 = vmatprep.subr.mxu0 0.0
        %525 = vmatpush1.msra.mxu0 0.0
        %526 = vmatprep.subr.mxu0 0.0
        %527 = vmatpush1.msra.mxu0 0.0
        %528 = vmatprep.subr.mxu0 0.0
        %529 = vmatpush1.msra.mxu0 0.0
        %530 = vmatprep.subr.mxu0 0.0
        %531 = vmatpush1.msra.mxu0 0.0
        %532 = vmatprep.subr.mxu0 0.0
        %533 = vmatpush1.msra.mxu0 0.0
        %534 = vmatprep.mubr.f32.mxu0 0.0
        %535 = vmatmul.mubr.f32.gmra.mrb[0].mxu0 %v462
        %v536 = vpop.f32.mrb[0].mxu0
        %v537 = vadd.f32 0.0, %v536
        %v538 = vpop.f32.mrb[0].mxu0
        %v539 = vadd.f32 0.0, %v538
        %540 = vmatprep.mubr.f32.mxu0 0.0
        %541 = vmatmul.mubr.f32.gmra.mrb[0].mxu0 %v464
        %v542 = vpop.f32.mrb[0].mxu0
        %v543 = vadd.f32 0.0, %v542
        %v544 = vpop.f32.mrb[0].mxu0
        %v545 = vadd.f32 0.0, %v544
        %546 = vmatprep.mubr.f32.mxu0 0.0
        %547 = vmatmul.mubr.f32.gmra.mrb[0].mxu0 %v466
        %v548 = vpop.f32.mrb[0].mxu0
        %v549 = vadd.f32 0.0, %v548
        %v550 = vpop.f32.mrb[0].mxu0
        %v551 = vadd.f32 0.0, %v550
        %552 = vmatprep.mubr.f32.mxu0 0.0
        %553 = vmatmul.mubr.f32.gmra.mrb[0].mxu0 %v468
        %v554 = vpop.f32.mrb[0].mxu0
        %v555 = vadd.f32 0.0, %v554
        %v556 = vpop.f32.mrb[0].mxu0
        %v557 = vadd.f32 0.0, %v556
        %558 = vdwg.mxu0
        %v559 = vadd.f32 %v421, %v537
        %v560 = vadd.f32 %v423, %v539
        %v561 = vadd.f32 %v427, %v543
        %v562 = vadd.f32 %v429, %v545
        %v563 = vadd.f32 %v433, %v549
        %v564 = vadd.f32 %v435, %v551
        %v565 = vadd.f32 %v439, %v555
        %v566 = vadd.f32 %v441, %v557
        %v567 = vld [vmem:[#allocation2 + $0x80] sm:$0xff]
        %v568 = vld [vmem:[#allocation2 + $0x88] sm:$0xff]
        %v569 = vld [vmem:[#allocation2 + $0x90] sm:$0xff]
        %v570 = vld [vmem:[#allocation2 + $0x98] sm:$0xff]
        %v571 = vld [vmem:[#allocation2 + $0xa0] sm:$0xff]
        %v572 = vld [vmem:[#allocation2 + $0xa8] sm:$0xff]
        %v573 = vld [vmem:[#allocation2 + $0xb0] sm:$0xff]
        %v574 = vld [vmem:[#allocation2 + $0xb8] sm:$0xff]
        %vm575 = vcmask 1041408
        %v576 = vrot.slane %v316, 6
        %v577 = vrot.slane %v317, 6
        %v578 = vsel %vm575, %v576, %v577
        %v579 = vrot.slane %v318, 6
        %v580 = vsel %vm575, %v577, %v579
        %v581 = vrot.slane %v319, 6
        %v582 = vsel %vm575, %v579, %v581
        %v583 = vrot.slane %v320, 6
        %v584 = vsel %vm575, %v581, %v583
        %v585 = vsel %vm341, %v578, 0
        %v587 = vsel %vm341, %v580, 0
        %v589 = vsel %vm341, %v582, 0
        %v591 = vsel %vm341, %v584, 0
        %593 = vmatprep.subr.mxu0 %v568
        %594 = vmatpush1.msra.mxu0 %v567
        %595 = vmatprep.subr.mxu0 %v570
        %596 = vmatpush1.msra.mxu0 %v569
        %597 = vmatprep.subr.mxu0 %v572
        %598 = vmatpush1.msra.mxu0 %v571
        %599 = vmatprep.subr.mxu0 %v574
        %600 = vmatpush1.msra.mxu0 %v573
        %601 = vmatprep.subr.mxu0 0.0
        %602 = vmatpush1.msra.mxu0 0.0
        %603 = vmatprep.subr.mxu0 0.0
        %604 = vmatpush1.msra.mxu0 0.0
        %605 = vmatprep.subr.mxu0 0.0
        %606 = vmatpush1.msra.mxu0 0.0
        %607 = vmatprep.subr.mxu0 0.0
        %608 = vmatpush1.msra.mxu0 0.0
        %609 = vmatprep.subr.mxu0 0.0
        %610 = vmatpush1.msra.mxu0 0.0
        %611 = vmatprep.subr.mxu0 0.0
        %612 = vmatpush1.msra.mxu0 0.0
        %613 = vmatprep.subr.mxu0 0.0
        %614 = vmatpush1.msra.mxu0 0.0
        %615 = vmatprep.subr.mxu0 0.0
        %616 = vmatpush1.msra.mxu0 0.0
        %617 = vmatprep.subr.mxu0 0.0
        %618 = vmatpush1.msra.mxu0 0.0
        %619 = vmatprep.subr.mxu0 0.0
        %620 = vmatpush1.msra.mxu0 0.0
        %621 = vmatprep.subr.mxu0 0.0
        %622 = vmatpush1.msra.mxu0 0.0
        %623 = vmatprep.subr.mxu0 0.0
        %624 = vmatpush1.msra.mxu0 0.0
        %625 = vmatprep.subr.mxu0 0.0
        %626 = vmatpush1.msra.mxu0 0.0
        %627 = vmatprep.subr.mxu0 0.0
        %628 = vmatpush1.msra.mxu0 0.0
        %629 = vmatprep.subr.mxu0 0.0
        %630 = vmatpush1.msra.mxu0 0.0
        %631 = vmatprep.subr.mxu0 0.0
        %632 = vmatpush1.msra.mxu0 0.0
        %633 = vmatprep.subr.mxu0 0.0
        %634 = vmatpush1.msra.mxu0 0.0
        %635 = vmatprep.subr.mxu0 0.0
        %636 = vmatpush1.msra.mxu0 0.0
        %637 = vmatprep.subr.mxu0 0.0
        %638 = vmatpush1.msra.mxu0 0.0
        %639 = vmatprep.subr.mxu0 0.0
        %640 = vmatpush1.msra.mxu0 0.0
        %641 = vmatprep.subr.mxu0 0.0
        %642 = vmatpush1.msra.mxu0 0.0
        %643 = vmatprep.subr.mxu0 0.0
        %644 = vmatpush1.msra.mxu0 0.0
        %645 = vmatprep.subr.mxu0 0.0
        %646 = vmatpush1.msra.mxu0 0.0
        %647 = vmatprep.subr.mxu0 0.0
        %648 = vmatpush1.msra.mxu0 0.0
        %649 = vmatprep.subr.mxu0 0.0
        %650 = vmatpush1.msra.mxu0 0.0
        %651 = vmatprep.subr.mxu0 0.0
        %652 = vmatpush1.msra.mxu0 0.0
        %653 = vmatprep.subr.mxu0 0.0
        %654 = vmatpush1.msra.mxu0 0.0
        %655 = vmatprep.subr.mxu0 0.0
        %656 = vmatpush1.msra.mxu0 0.0
        %657 = vmatprep.mubr.f32.mxu0 0.0
        %658 = vmatmul.mubr.f32.gmra.mrb[0].mxu0 %v585
        %v659 = vpop.f32.mrb[0].mxu0
        %v660 = vadd.f32 0.0, %v659
        %v661 = vpop.f32.mrb[0].mxu0
        %v662 = vadd.f32 0.0, %v661
        %663 = vmatprep.mubr.f32.mxu0 0.0
        %664 = vmatmul.mubr.f32.gmra.mrb[0].mxu0 %v587
        %v665 = vpop.f32.mrb[0].mxu0
        %v666 = vadd.f32 0.0, %v665
        %v667 = vpop.f32.mrb[0].mxu0
        %v668 = vadd.f32 0.0, %v667
        %669 = vmatprep.mubr.f32.mxu0 0.0
        %670 = vmatmul.mubr.f32.gmra.mrb[0].mxu0 %v589
        %v671 = vpop.f32.mrb[0].mxu0
        %v672 = vadd.f32 0.0, %v671
        %v673 = vpop.f32.mrb[0].mxu0
        %v674 = vadd.f32 0.0, %v673
        %675 = vmatprep.mubr.f32.mxu0 0.0
        %676 = vmatmul.mubr.f32.gmra.mrb[0].mxu0 %v591
        %v677 = vpop.f32.mrb[0].mxu0
        %v678 = vadd.f32 0.0, %v677
        %v679 = vpop.f32.mrb[0].mxu0
        %v680 = vadd.f32 0.0, %v679
        %681 = vdwg.mxu0
        %v682 = vadd.f32 %v559, %v660
        %v683 = vadd.f32 %v560, %v662
        %v684 = vadd.f32 %v561, %v666
        %v685 = vadd.f32 %v562, %v668
        %v686 = vadd.f32 %v563, %v672
        %v687 = vadd.f32 %v564, %v674
        %v688 = vadd.f32 %v565, %v678
        %v689 = vadd.f32 %v566, %v680
        %v690 = vld [vmem:[#allocation2 + $0xc0] sm:$0xff]
        %v691 = vld [vmem:[#allocation2 + $0xc8] sm:$0xff]
        %v692 = vld [vmem:[#allocation2 + $0xd0] sm:$0xff]
        %v693 = vld [vmem:[#allocation2 + $0xd8] sm:$0xff]
        %v694 = vld [vmem:[#allocation2 + $0xe0] sm:$0xff]
        %v695 = vld [vmem:[#allocation2 + $0xe8] sm:$0xff]
        %v696 = vld [vmem:[#allocation2 + $0xf0] sm:$0xff]
        %v697 = vld [vmem:[#allocation2 + $0xf8] sm:$0xff]
        %vm698 = vcmask 1042432
        %v699 = vrot.slane %v316, 5
        %v700 = vrot.slane %v317, 5
        %v701 = vsel %vm698, %v699, %v700
        %v702 = vrot.slane %v318, 5
        %v703 = vsel %vm698, %v700, %v702
        %v704 = vrot.slane %v319, 5
        %v705 = vsel %vm698, %v702, %v704
        %v706 = vrot.slane %v320, 5
        %v707 = vsel %vm698, %v704, %v706
        %v708 = vsel %vm341, %v701, 0
        %v710 = vsel %vm341, %v703, 0
        %v712 = vsel %vm341, %v705, 0
        %v714 = vsel %vm341, %v707, 0
        %716 = vmatprep.subr.mxu0 %v691
        %717 = vmatpush1.msra.mxu0 %v690
        %718 = vmatprep.subr.mxu0 %v693
        %719 = vmatpush1.msra.mxu0 %v692
        %720 = vmatprep.subr.mxu0 %v695
        %721 = vmatpush1.msra.mxu0 %v694
        %722 = vmatprep.subr.mxu0 %v697
        %723 = vmatpush1.msra.mxu0 %v696
        %724 = vmatprep.subr.mxu0 0.0
        %725 = vmatpush1.msra.mxu0 0.0
        %726 = vmatprep.subr.mxu0 0.0
        %727 = vmatpush1.msra.mxu0 0.0
        %728 = vmatprep.subr.mxu0 0.0
        %729 = vmatpush1.msra.mxu0 0.0
        %730 = vmatprep.subr.mxu0 0.0
        %731 = vmatpush1.msra.mxu0 0.0
        %732 = vmatprep.subr.mxu0 0.0
        %733 = vmatpush1.msra.mxu0 0.0
        %734 = vmatprep.subr.mxu0 0.0
        %735 = vmatpush1.msra.mxu0 0.0
        %736 = vmatprep.subr.mxu0 0.0
        %737 = vmatpush1.msra.mxu0 0.0
        %738 = vmatprep.subr.mxu0 0.0
        %739 = vmatpush1.msra.mxu0 0.0
        %740 = vmatprep.subr.mxu0 0.0
        %741 = vmatpush1.msra.mxu0 0.0
        %742 = vmatprep.subr.mxu0 0.0
        %743 = vmatpush1.msra.mxu0 0.0
        %744 = vmatprep.subr.mxu0 0.0
        %745 = vmatpush1.msra.mxu0 0.0
        %746 = vmatprep.subr.mxu0 0.0
        %747 = vmatpush1.msra.mxu0 0.0
        %748 = vmatprep.subr.mxu0 0.0
        %749 = vmatpush1.msra.mxu0 0.0
        %750 = vmatprep.subr.mxu0 0.0
        %751 = vmatpush1.msra.mxu0 0.0
        %752 = vmatprep.subr.mxu0 0.0
        %753 = vmatpush1.msra.mxu0 0.0
        %754 = vmatprep.subr.mxu0 0.0
        %755 = vmatpush1.msra.mxu0 0.0
        %756 = vmatprep.subr.mxu0 0.0
        %757 = vmatpush1.msra.mxu0 0.0
        %758 = vmatprep.subr.mxu0 0.0
        %759 = vmatpush1.msra.mxu0 0.0
        %760 = vmatprep.subr.mxu0 0.0
        %761 = vmatpush1.msra.mxu0 0.0
        %762 = vmatprep.subr.mxu0 0.0
        %763 = vmatpush1.msra.mxu0 0.0
        %764 = vmatprep.subr.mxu0 0.0
        %765 = vmatpush1.msra.mxu0 0.0
        %766 = vmatprep.subr.mxu0 0.0
        %767 = vmatpush1.msra.mxu0 0.0
        %768 = vmatprep.subr.mxu0 0.0
        %769 = vmatpush1.msra.mxu0 0.0
        %770 = vmatprep.subr.mxu0 0.0
        %771 = vmatpush1.msra.mxu0 0.0
        %772 = vmatprep.subr.mxu0 0.0
        %773 = vmatpush1.msra.mxu0 0.0
        %774 = vmatprep.subr.mxu0 0.0
        %775 = vmatpush1.msra.mxu0 0.0
        %776 = vmatprep.subr.mxu0 0.0
        %777 = vmatpush1.msra.mxu0 0.0
        %778 = vmatprep.subr.mxu0 0.0
        %779 = vmatpush1.msra.mxu0 0.0
        %780 = vmatprep.mubr.f32.mxu0 0.0
        %781 = vmatmul.mubr.f32.gmra.mrb[0].mxu0 %v708
        %v782 = vpop.f32.mrb[0].mxu0
        %v783 = vadd.f32 0.0, %v782
        %v784 = vpop.f32.mrb[0].mxu0
        %v785 = vadd.f32 0.0, %v784
        %786 = vmatprep.mubr.f32.mxu0 0.0
        %787 = vmatmul.mubr.f32.gmra.mrb[0].mxu0 %v710
        %v788 = vpop.f32.mrb[0].mxu0
        %v789 = vadd.f32 0.0, %v788
        %v790 = vpop.f32.mrb[0].mxu0
        %v791 = vadd.f32 0.0, %v790
        %792 = vmatprep.mubr.f32.mxu0 0.0
        %793 = vmatmul.mubr.f32.gmra.mrb[0].mxu0 %v712
        %v794 = vpop.f32.mrb[0].mxu0
        %v795 = vadd.f32 0.0, %v794
        %v796 = vpop.f32.mrb[0].mxu0
        %v797 = vadd.f32 0.0, %v796
        %798 = vmatprep.mubr.f32.mxu0 0.0
        %799 = vmatmul.mubr.f32.gmra.mrb[0].mxu0 %v714
        %v800 = vpop.f32.mrb[0].mxu0
        %v801 = vadd.f32 0.0, %v800
        %v802 = vpop.f32.mrb[0].mxu0
        %v803 = vadd.f32 0.0, %v802
        %804 = vdwg.mxu0
        %v805 = vadd.f32 %v682, %v783
        %v806 = vadd.f32 %v683, %v785
        %v807 = vadd.f32 %v684, %v789
        %v808 = vadd.f32 %v685, %v791
        %v809 = vadd.f32 %v686, %v795
        %v810 = vadd.f32 %v687, %v797
        %v811 = vadd.f32 %v688, %v801
        %v812 = vadd.f32 %v689, %v803
        %v813 = vld [vmem:[#allocation2 + $0x100] sm:$0xff]
        %v814 = vld [vmem:[#allocation2 + $0x108] sm:$0xff]
        %v815 = vld [vmem:[#allocation2 + $0x110] sm:$0xff]
        %v816 = vld [vmem:[#allocation2 + $0x118] sm:$0xff]
        %v817 = vld [vmem:[#allocation2 + $0x120] sm:$0xff]
        %v818 = vld [vmem:[#allocation2 + $0x128] sm:$0xff]
        %v819 = vld [vmem:[#allocation2 + $0x130] sm:$0xff]
        %v820 = vld [vmem:[#allocation2 + $0x138] sm:$0xff]
        %vm821 = vcmask 1043456
        %v822 = vrot.slane %v316, 4
        %v823 = vrot.slane %v317, 4
        %v824 = vsel %vm821, %v822, %v823
        %v825 = vrot.slane %v318, 4
        %v826 = vsel %vm821, %v823, %v825
        %v827 = vrot.slane %v319, 4
        %v828 = vsel %vm821, %v825, %v827
        %v829 = vrot.slane %v320, 4
        %v830 = vsel %vm821, %v827, %v829
        %v831 = vsel %vm341, %v824, 0
        %v833 = vsel %vm341, %v826, 0
        %v835 = vsel %vm341, %v828, 0
        %v837 = vsel %vm341, %v830, 0
        %839 = vmatprep.subr.mxu0 %v814
        %840 = vmatpush1.msra.mxu0 %v813
        %841 = vmatprep.subr.mxu0 %v816
        %842 = vmatpush1.msra.mxu0 %v815
        %843 = vmatprep.subr.mxu0 %v818
        %844 = vmatpush1.msra.mxu0 %v817
        %845 = vmatprep.subr.mxu0 %v820
        %846 = vmatpush1.msra.mxu0 %v819
        %847 = vmatprep.subr.mxu0 0.0
        %848 = vmatpush1.msra.mxu0 0.0
        %849 = vmatprep.subr.mxu0 0.0
        %850 = vmatpush1.msra.mxu0 0.0
        %851 = vmatprep.subr.mxu0 0.0
        %852 = vmatpush1.msra.mxu0 0.0
        %853 = vmatprep.subr.mxu0 0.0
        %854 = vmatpush1.msra.mxu0 0.0
        %855 = vmatprep.subr.mxu0 0.0
        %856 = vmatpush1.msra.mxu0 0.0
        %857 = vmatprep.subr.mxu0 0.0
        %858 = vmatpush1.msra.mxu0 0.0
        %859 = vmatprep.subr.mxu0 0.0
        %860 = vmatpush1.msra.mxu0 0.0
        %861 = vmatprep.subr.mxu0 0.0
        %862 = vmatpush1.msra.mxu0 0.0
        %863 = vmatprep.subr.mxu0 0.0
        %864 = vmatpush1.msra.mxu0 0.0
        %865 = vmatprep.subr.mxu0 0.0
        %866 = vmatpush1.msra.mxu0 0.0
        %867 = vmatprep.subr.mxu0 0.0
        %868 = vmatpush1.msra.mxu0 0.0
        %869 = vmatprep.subr.mxu0 0.0
        %870 = vmatpush1.msra.mxu0 0.0
        %871 = vmatprep.subr.mxu0 0.0
        %872 = vmatpush1.msra.mxu0 0.0
        %873 = vmatprep.subr.mxu0 0.0
        %874 = vmatpush1.msra.mxu0 0.0
        %875 = vmatprep.subr.mxu0 0.0
        %876 = vmatpush1.msra.mxu0 0.0
        %877 = vmatprep.subr.mxu0 0.0
        %878 = vmatpush1.msra.mxu0 0.0
        %879 = vmatprep.subr.mxu0 0.0
        %880 = vmatpush1.msra.mxu0 0.0
        %881 = vmatprep.subr.mxu0 0.0
        %882 = vmatpush1.msra.mxu0 0.0
        %883 = vmatprep.subr.mxu0 0.0
        %884 = vmatpush1.msra.mxu0 0.0
        %885 = vmatprep.subr.mxu0 0.0
        %886 = vmatpush1.msra.mxu0 0.0
        %887 = vmatprep.subr.mxu0 0.0
        %888 = vmatpush1.msra.mxu0 0.0
        %889 = vmatprep.subr.mxu0 0.0
        %890 = vmatpush1.msra.mxu0 0.0
        %891 = vmatprep.subr.mxu0 0.0
        %892 = vmatpush1.msra.mxu0 0.0
        %893 = vmatprep.subr.mxu0 0.0
        %894 = vmatpush1.msra.mxu0 0.0
        %895 = vmatprep.subr.mxu0 0.0
        %896 = vmatpush1.msra.mxu0 0.0
        %897 = vmatprep.subr.mxu0 0.0
        %898 = vmatpush1.msra.mxu0 0.0
        %899 = vmatprep.subr.mxu0 0.0
        %900 = vmatpush1.msra.mxu0 0.0
        %901 = vmatprep.subr.mxu0 0.0
        %902 = vmatpush1.msra.mxu0 0.0
        %903 = vmatprep.mubr.f32.mxu0 0.0
        %904 = vmatmul.mubr.f32.gmra.mrb[0].mxu0 %v831
        %v905 = vpop.f32.mrb[0].mxu0
        %v906 = vadd.f32 0.0, %v905
        %v907 = vpop.f32.mrb[0].mxu0
        %v908 = vadd.f32 0.0, %v907
        %909 = vmatprep.mubr.f32.mxu0 0.0
        %910 = vmatmul.mubr.f32.gmra.mrb[0].mxu0 %v833
        %v911 = vpop.f32.mrb[0].mxu0
        %v912 = vadd.f32 0.0, %v911
        %v913 = vpop.f32.mrb[0].mxu0
        %v914 = vadd.f32 0.0, %v913
        %915 = vmatprep.mubr.f32.mxu0 0.0
        %916 = vmatmul.mubr.f32.gmra.mrb[0].mxu0 %v835
        %v917 = vpop.f32.mrb[0].mxu0
        %v918 = vadd.f32 0.0, %v917
        %v919 = vpop.f32.mrb[0].mxu0
        %v920 = vadd.f32 0.0, %v919
        %921 = vmatprep.mubr.f32.mxu0 0.0
        %922 = vmatmul.mubr.f32.gmra.mrb[0].mxu0 %v837
        %v923 = vpop.f32.mrb[0].mxu0
        %v924 = vadd.f32 0.0, %v923
        %v925 = vpop.f32.mrb[0].mxu0
        %v926 = vadd.f32 0.0, %v925
        %927 = vdwg.mxu0
        %v928 = vadd.f32 %v805, %v906
        %v929 = vadd.f32 %v806, %v908
        %v930 = vadd.f32 %v807, %v912
        %v931 = vadd.f32 %v808, %v914
        %v932 = vadd.f32 %v809, %v918
        %v933 = vadd.f32 %v810, %v920
        %v934 = vadd.f32 %v811, %v924
        %v935 = vadd.f32 %v812, %v926
        %v936 = vld [vmem:[#allocation2 + $0x140] sm:$0xff]
        %v937 = vld [vmem:[#allocation2 + $0x148] sm:$0xff]
        %v938 = vld [vmem:[#allocation2 + $0x150] sm:$0xff]
        %v939 = vld [vmem:[#allocation2 + $0x158] sm:$0xff]
        %v940 = vld [vmem:[#allocation2 + $0x160] sm:$0xff]
        %v941 = vld [vmem:[#allocation2 + $0x168] sm:$0xff]
        %v942 = vld [vmem:[#allocation2 + $0x170] sm:$0xff]
        %v943 = vld [vmem:[#allocation2 + $0x178] sm:$0xff]
        %vm944 = vcmask 1044480
        %v945 = vrot.slane %v316, 3
        %v946 = vrot.slane %v317, 3
        %v947 = vsel %vm944, %v945, %v946
        %v948 = vrot.slane %v318, 3
        %v949 = vsel %vm944, %v946, %v948
        %v950 = vrot.slane %v319, 3
        %v951 = vsel %vm944, %v948, %v950
        %v952 = vrot.slane %v320, 3
        %v953 = vsel %vm944, %v950, %v952
        %v954 = vsel %vm341, %v947, 0
        %v956 = vsel %vm341, %v949, 0
        %v958 = vsel %vm341, %v951, 0
        %v960 = vsel %vm341, %v953, 0
        %962 = vmatprep.subr.mxu0 %v937
        %963 = vmatpush1.msra.mxu0 %v936
        %964 = vmatprep.subr.mxu0 %v939
        %965 = vmatpush1.msra.mxu0 %v938
        %966 = vmatprep.subr.mxu0 %v941
        %967 = vmatpush1.msra.mxu0 %v940
        %968 = vmatprep.subr.mxu0 %v943
        %969 = vmatpush1.msra.mxu0 %v942
        %970 = vmatprep.subr.mxu0 0.0
        %971 = vmatpush1.msra.mxu0 0.0
        %972 = vmatprep.subr.mxu0 0.0
        %973 = vmatpush1.msra.mxu0 0.0
        %974 = vmatprep.subr.mxu0 0.0
        %975 = vmatpush1.msra.mxu0 0.0
        %976 = vmatprep.subr.mxu0 0.0
        %977 = vmatpush1.msra.mxu0 0.0
        %978 = vmatprep.subr.mxu0 0.0
        %979 = vmatpush1.msra.mxu0 0.0
        %980 = vmatprep.subr.mxu0 0.0
        %981 = vmatpush1.msra.mxu0 0.0
        %982 = vmatprep.subr.mxu0 0.0
        %983 = vmatpush1.msra.mxu0 0.0
        %984 = vmatprep.subr.mxu0 0.0
        %985 = vmatpush1.msra.mxu0 0.0
        %986 = vmatprep.subr.mxu0 0.0
        %987 = vmatpush1.msra.mxu0 0.0
        %988 = vmatprep.subr.mxu0 0.0
        %989 = vmatpush1.msra.mxu0 0.0
        %990 = vmatprep.subr.mxu0 0.0
        %991 = vmatpush1.msra.mxu0 0.0
        %992 = vmatprep.subr.mxu0 0.0
        %993 = vmatpush1.msra.mxu0 0.0
        %994 = vmatprep.subr.mxu0 0.0
        %995 = vmatpush1.msra.mxu0 0.0
        %996 = vmatprep.subr.mxu0 0.0
        %997 = vmatpush1.msra.mxu0 0.0
        %998 = vmatprep.subr.mxu0 0.0
        %999 = vmatpush1.msra.mxu0 0.0
        %1000 = vmatprep.subr.mxu0 0.0
        %1001 = vmatpush1.msra.mxu0 0.0
        %1002 = vmatprep.subr.mxu0 0.0
        %1003 = vmatpush1.msra.mxu0 0.0
        %1004 = vmatprep.subr.mxu0 0.0
        %1005 = vmatpush1.msra.mxu0 0.0
        %1006 = vmatprep.subr.mxu0 0.0
        %1007 = vmatpush1.msra.mxu0 0.0
        %1008 = vmatprep.subr.mxu0 0.0
        %1009 = vmatpush1.msra.mxu0 0.0
        %1010 = vmatprep.subr.mxu0 0.0
        %1011 = vmatpush1.msra.mxu0 0.0
        %1012 = vmatprep.subr.mxu0 0.0
        %1013 = vmatpush1.msra.mxu0 0.0
        %1014 = vmatprep.subr.mxu0 0.0
        %1015 = vmatpush1.msra.mxu0 0.0
        %1016 = vmatprep.subr.mxu0 0.0
        %1017 = vmatpush1.msra.mxu0 0.0
        %1018 = vmatprep.subr.mxu0 0.0
        %1019 = vmatpush1.msra.mxu0 0.0
        %1020 = vmatprep.subr.mxu0 0.0
        %1021 = vmatpush1.msra.mxu0 0.0
        %1022 = vmatprep.subr.mxu0 0.0
        %1023 = vmatpush1.msra.mxu0 0.0
        %1024 = vmatprep.subr.mxu0 0.0
        %1025 = vmatpush1.msra.mxu0 0.0
        %1026 = vmatprep.mubr.f32.mxu0 0.0
        %1027 = vmatmul.mubr.f32.gmra.mrb[0].mxu0 %v954
        %v1028 = vpop.f32.mrb[0].mxu0
        %v1029 = vadd.f32 0.0, %v1028
        %v1030 = vpop.f32.mrb[0].mxu0
        %v1031 = vadd.f32 0.0, %v1030
        %1032 = vmatprep.mubr.f32.mxu0 0.0
        %1033 = vmatmul.mubr.f32.gmra.mrb[0].mxu0 %v956
        %v1034 = vpop.f32.mrb[0].mxu0
        %v1035 = vadd.f32 0.0, %v1034
        %v1036 = vpop.f32.mrb[0].mxu0
        %v1037 = vadd.f32 0.0, %v1036
        %1038 = vmatprep.mubr.f32.mxu0 0.0
        %1039 = vmatmul.mubr.f32.gmra.mrb[0].mxu0 %v958
        %v1040 = vpop.f32.mrb[0].mxu0
        %v1041 = vadd.f32 0.0, %v1040
        %v1042 = vpop.f32.mrb[0].mxu0
        %v1043 = vadd.f32 0.0, %v1042
        %1044 = vmatprep.mubr.f32.mxu0 0.0
        %1045 = vmatmul.mubr.f32.gmra.mrb[0].mxu0 %v960
        %v1046 = vpop.f32.mrb[0].mxu0
        %v1047 = vadd.f32 0.0, %v1046
        %v1048 = vpop.f32.mrb[0].mxu0
        %v1049 = vadd.f32 0.0, %v1048
        %1050 = vdwg.mxu0
        %v1051 = vadd.f32 %v928, %v1029
        %v1052 = vadd.f32 %v929, %v1031
        %v1053 = vadd.f32 %v930, %v1035
        %v1054 = vadd.f32 %v931, %v1037
        %v1055 = vadd.f32 %v932, %v1041
        %v1056 = vadd.f32 %v933, %v1043
        %v1057 = vadd.f32 %v934, %v1047
        %v1058 = vadd.f32 %v935, %v1049
        %v1059 = vld [vmem:[#allocation2 + $0x180] sm:$0xff]
        %v1060 = vld [vmem:[#allocation2 + $0x188] sm:$0xff]
        %v1061 = vld [vmem:[#allocation2 + $0x190] sm:$0xff]
        %v1062 = vld [vmem:[#allocation2 + $0x198] sm:$0xff]
        %v1063 = vld [vmem:[#allocation2 + $0x1a0] sm:$0xff]
        %v1064 = vld [vmem:[#allocation2 + $0x1a8] sm:$0xff]
        %v1065 = vld [vmem:[#allocation2 + $0x1b0] sm:$0xff]
        %v1066 = vld [vmem:[#allocation2 + $0x1b8] sm:$0xff]
        %vm1067 = vcmask 1045504
        %v1068 = vrot.slane %v316, 2
        %v1069 = vrot.slane %v317, 2
        %v1070 = vsel %vm1067, %v1068, %v1069
        %v1071 = vrot.slane %v318, 2
        %v1072 = vsel %vm1067, %v1069, %v1071
        %v1073 = vrot.slane %v319, 2
        %v1074 = vsel %vm1067, %v1071, %v1073
        %v1075 = vrot.slane %v320, 2
        %v1076 = vsel %vm1067, %v1073, %v1075
        %v1077 = vsel %vm341, %v1070, 0
        %v1079 = vsel %vm341, %v1072, 0
        %v1081 = vsel %vm341, %v1074, 0
        %v1083 = vsel %vm341, %v1076, 0
        %1085 = vmatprep.subr.mxu0 %v1060
        %1086 = vmatpush1.msra.mxu0 %v1059
        %1087 = vmatprep.subr.mxu0 %v1062
        %1088 = vmatpush1.msra.mxu0 %v1061
        %1089 = vmatprep.subr.mxu0 %v1064
        %1090 = vmatpush1.msra.mxu0 %v1063
        %1091 = vmatprep.subr.mxu0 %v1066
        %1092 = vmatpush1.msra.mxu0 %v1065
        %1093 = vmatprep.subr.mxu0 0.0
        %1094 = vmatpush1.msra.mxu0 0.0
        %1095 = vmatprep.subr.mxu0 0.0
        %1096 = vmatpush1.msra.mxu0 0.0
        %1097 = vmatprep.subr.mxu0 0.0
        %1098 = vmatpush1.msra.mxu0 0.0
        %1099 = vmatprep.subr.mxu0 0.0
        %1100 = vmatpush1.msra.mxu0 0.0
        %1101 = vmatprep.subr.mxu0 0.0
        %1102 = vmatpush1.msra.mxu0 0.0
        %1103 = vmatprep.subr.mxu0 0.0
        %1104 = vmatpush1.msra.mxu0 0.0
        %1105 = vmatprep.subr.mxu0 0.0
        %1106 = vmatpush1.msra.mxu0 0.0
        %1107 = vmatprep.subr.mxu0 0.0
        %1108 = vmatpush1.msra.mxu0 0.0
        %1109 = vmatprep.subr.mxu0 0.0
        %1110 = vmatpush1.msra.mxu0 0.0
        %1111 = vmatprep.subr.mxu0 0.0
        %1112 = vmatpush1.msra.mxu0 0.0
        %1113 = vmatprep.subr.mxu0 0.0
        %1114 = vmatpush1.msra.mxu0 0.0
        %1115 = vmatprep.subr.mxu0 0.0
        %1116 = vmatpush1.msra.mxu0 0.0
        %1117 = vmatprep.subr.mxu0 0.0
        %1118 = vmatpush1.msra.mxu0 0.0
        %1119 = vmatprep.subr.mxu0 0.0
        %1120 = vmatpush1.msra.mxu0 0.0
        %1121 = vmatprep.subr.mxu0 0.0
        %1122 = vmatpush1.msra.mxu0 0.0
        %1123 = vmatprep.subr.mxu0 0.0
        %1124 = vmatpush1.msra.mxu0 0.0
        %1125 = vmatprep.subr.mxu0 0.0
        %1126 = vmatpush1.msra.mxu0 0.0
        %1127 = vmatprep.subr.mxu0 0.0
        %1128 = vmatpush1.msra.mxu0 0.0
        %1129 = vmatprep.subr.mxu0 0.0
        %1130 = vmatpush1.msra.mxu0 0.0
        %1131 = vmatprep.subr.mxu0 0.0
        %1132 = vmatpush1.msra.mxu0 0.0
        %1133 = vmatprep.subr.mxu0 0.0
        %1134 = vmatpush1.msra.mxu0 0.0
        %1135 = vmatprep.subr.mxu0 0.0
        %1136 = vmatpush1.msra.mxu0 0.0
        %1137 = vmatprep.subr.mxu0 0.0
        %1138 = vmatpush1.msra.mxu0 0.0
        %1139 = vmatprep.subr.mxu0 0.0
        %1140 = vmatpush1.msra.mxu0 0.0
        %1141 = vmatprep.subr.mxu0 0.0
        %1142 = vmatpush1.msra.mxu0 0.0
        %1143 = vmatprep.subr.mxu0 0.0
        %1144 = vmatpush1.msra.mxu0 0.0
        %1145 = vmatprep.subr.mxu0 0.0
        %1146 = vmatpush1.msra.mxu0 0.0
        %1147 = vmatprep.subr.mxu0 0.0
        %1148 = vmatpush1.msra.mxu0 0.0
        %1149 = vmatprep.mubr.f32.mxu0 0.0
        %1150 = vmatmul.mubr.f32.gmra.mrb[0].mxu0 %v1077
        %v1151 = vpop.f32.mrb[0].mxu0
        %v1152 = vadd.f32 0.0, %v1151
        %v1153 = vpop.f32.mrb[0].mxu0
        %v1154 = vadd.f32 0.0, %v1153
        %1155 = vmatprep.mubr.f32.mxu0 0.0
        %1156 = vmatmul.mubr.f32.gmra.mrb[0].mxu0 %v1079
        %v1157 = vpop.f32.mrb[0].mxu0
        %v1158 = vadd.f32 0.0, %v1157
        %v1159 = vpop.f32.mrb[0].mxu0
        %v1160 = vadd.f32 0.0, %v1159
        %1161 = vmatprep.mubr.f32.mxu0 0.0
        %1162 = vmatmul.mubr.f32.gmra.mrb[0].mxu0 %v1081
        %v1163 = vpop.f32.mrb[0].mxu0
        %v1164 = vadd.f32 0.0, %v1163
        %v1165 = vpop.f32.mrb[0].mxu0
        %v1166 = vadd.f32 0.0, %v1165
        %1167 = vmatprep.mubr.f32.mxu0 0.0
        %1168 = vmatmul.mubr.f32.gmra.mrb[0].mxu0 %v1083
        %v1169 = vpop.f32.mrb[0].mxu0
        %v1170 = vadd.f32 0.0, %v1169
        %v1171 = vpop.f32.mrb[0].mxu0
        %v1172 = vadd.f32 0.0, %v1171
        %1173 = vdwg.mxu0
        %v1174 = vadd.f32 %v1051, %v1152
        %v1175 = vadd.f32 %v1052, %v1154
        %v1176 = vadd.f32 %v1053, %v1158
        %v1177 = vadd.f32 %v1054, %v1160
        %v1178 = vadd.f32 %v1055, %v1164
        %v1179 = vadd.f32 %v1056, %v1166
        %v1180 = vadd.f32 %v1057, %v1170
        %v1181 = vadd.f32 %v1058, %v1172
        %v1182 = vld [vmem:[#allocation2 + $0x1c0] sm:$0xff]
        %v1183 = vld [vmem:[#allocation2 + $0x1c8] sm:$0xff]
        %v1184 = vld [vmem:[#allocation2 + $0x1d0] sm:$0xff]
        %v1185 = vld [vmem:[#allocation2 + $0x1d8] sm:$0xff]
        %v1186 = vld [vmem:[#allocation2 + $0x1e0] sm:$0xff]
        %v1187 = vld [vmem:[#allocation2 + $0x1e8] sm:$0xff]
        %v1188 = vld [vmem:[#allocation2 + $0x1f0] sm:$0xff]
        %v1189 = vld [vmem:[#allocation2 + $0x1f8] sm:$0xff]
        %vm1190 = vcmask 1046528
        %v1191 = vrot.slane %v316, 1
        %v1192 = vrot.slane %v317, 1
        %v1193 = vsel %vm1190, %v1191, %v1192
        %v1194 = vrot.slane %v318, 1
        %v1195 = vsel %vm1190, %v1192, %v1194
        %v1196 = vrot.slane %v319, 1
        %v1197 = vsel %vm1190, %v1194, %v1196
        %v1198 = vrot.slane %v320, 1
        %v1199 = vsel %vm1190, %v1196, %v1198
        %v1200 = vsel %vm341, %v1193, 0
        %v1202 = vsel %vm341, %v1195, 0
        %v1204 = vsel %vm341, %v1197, 0
        %v1206 = vsel %vm341, %v1199, 0
        %1208 = vmatprep.subr.mxu0 %v1183
        %1209 = vmatpush1.msra.mxu0 %v1182
        %1210 = vmatprep.subr.mxu0 %v1185
        %1211 = vmatpush1.msra.mxu0 %v1184
        %1212 = vmatprep.subr.mxu0 %v1187
        %1213 = vmatpush1.msra.mxu0 %v1186
        %1214 = vmatprep.subr.mxu0 %v1189
        %1215 = vmatpush1.msra.mxu0 %v1188
        %1216 = vmatprep.subr.mxu0 0.0
        %1217 = vmatpush1.msra.mxu0 0.0
        %1218 = vmatprep.subr.mxu0 0.0
        %1219 = vmatpush1.msra.mxu0 0.0
        %1220 = vmatprep.subr.mxu0 0.0
        %1221 = vmatpush1.msra.mxu0 0.0
        %1222 = vmatprep.subr.mxu0 0.0
        %1223 = vmatpush1.msra.mxu0 0.0
        %1224 = vmatprep.subr.mxu0 0.0
        %1225 = vmatpush1.msra.mxu0 0.0
        %1226 = vmatprep.subr.mxu0 0.0
        %1227 = vmatpush1.msra.mxu0 0.0
        %1228 = vmatprep.subr.mxu0 0.0
        %1229 = vmatpush1.msra.mxu0 0.0
        %1230 = vmatprep.subr.mxu0 0.0
        %1231 = vmatpush1.msra.mxu0 0.0
        %1232 = vmatprep.subr.mxu0 0.0
        %1233 = vmatpush1.msra.mxu0 0.0
        %1234 = vmatprep.subr.mxu0 0.0
        %1235 = vmatpush1.msra.mxu0 0.0
        %1236 = vmatprep.subr.mxu0 0.0
        %1237 = vmatpush1.msra.mxu0 0.0
        %1238 = vmatprep.subr.mxu0 0.0
        %1239 = vmatpush1.msra.mxu0 0.0
        %1240 = vmatprep.subr.mxu0 0.0
        %1241 = vmatpush1.msra.mxu0 0.0
        %1242 = vmatprep.subr.mxu0 0.0
        %1243 = vmatpush1.msra.mxu0 0.0
        %1244 = vmatprep.subr.mxu0 0.0
        %1245 = vmatpush1.msra.mxu0 0.0
        %1246 = vmatprep.subr.mxu0 0.0
        %1247 = vmatpush1.msra.mxu0 0.0
        %1248 = vmatprep.subr.mxu0 0.0
        %1249 = vmatpush1.msra.mxu0 0.0
        %1250 = vmatprep.subr.mxu0 0.0
        %1251 = vmatpush1.msra.mxu0 0.0
        %1252 = vmatprep.subr.mxu0 0.0
        %1253 = vmatpush1.msra.mxu0 0.0
        %1254 = vmatprep.subr.mxu0 0.0
        %1255 = vmatpush1.msra.mxu0 0.0
        %1256 = vmatprep.subr.mxu0 0.0
        %1257 = vmatpush1.msra.mxu0 0.0
        %1258 = vmatprep.subr.mxu0 0.0
        %1259 = vmatpush1.msra.mxu0 0.0
        %1260 = vmatprep.subr.mxu0 0.0
        %1261 = vmatpush1.msra.mxu0 0.0
        %1262 = vmatprep.subr.mxu0 0.0
        %1263 = vmatpush1.msra.mxu0 0.0
        %1264 = vmatprep.subr.mxu0 0.0
        %1265 = vmatpush1.msra.mxu0 0.0
        %1266 = vmatprep.subr.mxu0 0.0
        %1267 = vmatpush1.msra.mxu0 0.0
        %1268 = vmatprep.subr.mxu0 0.0
        %1269 = vmatpush1.msra.mxu0 0.0
        %1270 = vmatprep.subr.mxu0 0.0
        %1271 = vmatpush1.msra.mxu0 0.0
        %1272 = vmatprep.mubr.f32.mxu0 0.0
        %1273 = vmatmul.mubr.f32.gmra.mrb[0].mxu0 %v1200
        %v1274 = vpop.f32.mrb[0].mxu0
        %v1275 = vadd.f32 0.0, %v1274
        %v1276 = vpop.f32.mrb[0].mxu0
        %v1277 = vadd.f32 0.0, %v1276
        %1278 = vmatprep.mubr.f32.mxu0 0.0
        %1279 = vmatmul.mubr.f32.gmra.mrb[0].mxu0 %v1202
        %v1280 = vpop.f32.mrb[0].mxu0
        %v1281 = vadd.f32 0.0, %v1280
        %v1282 = vpop.f32.mrb[0].mxu0
        %v1283 = vadd.f32 0.0, %v1282
        %1284 = vmatprep.mubr.f32.mxu0 0.0
        %1285 = vmatmul.mubr.f32.gmra.mrb[0].mxu0 %v1204
        %v1286 = vpop.f32.mrb[0].mxu0
        %v1287 = vadd.f32 0.0, %v1286
        %v1288 = vpop.f32.mrb[0].mxu0
        %v1289 = vadd.f32 0.0, %v1288
        %1290 = vmatprep.mubr.f32.mxu0 0.0
        %1291 = vmatmul.mubr.f32.gmra.mrb[0].mxu0 %v1206
        %v1292 = vpop.f32.mrb[0].mxu0
        %v1293 = vadd.f32 0.0, %v1292
        %v1294 = vpop.f32.mrb[0].mxu0
        %v1295 = vadd.f32 0.0, %v1294
        %1296 = vdwg.mxu0
        %v1297 = vadd.f32 %v1174, %v1275
        %v1298 = vadd.f32 %v1175, %v1277
        %v1299 = vadd.f32 %v1176, %v1281
        %v1300 = vadd.f32 %v1177, %v1283
        %v1301 = vadd.f32 %v1178, %v1287
        %v1302 = vadd.f32 %v1179, %v1289
        %v1303 = vadd.f32 %v1180, %v1293
        %v1304 = vadd.f32 %v1181, %v1295
        %1305 = vst [vmem:[%s278] sm:$0xff] %v1297
        %1306 = vst [vmem:[%s278 + $0x8] sm:$0xff] %v1298
        %1307 = vst [vmem:[%s278 + $0x10] sm:$0xff] %v1299
        %1308 = vst [vmem:[%s278 + $0x18] sm:$0xff] %v1300
        %1309 = vst [vmem:[%s278 + $0x20] sm:$0xff] %v1301
        %1310 = vst [vmem:[%s278 + $0x28] sm:$0xff] %v1302
        %1311 = vst [vmem:[%s278 + $0x30] sm:$0xff] %v1303
        %1312 = vst [vmem:[%s278 + $0x38] sm:$0xff] %v1304
        // Predicated region
        $region45: #{tpu_custom_call.1} parent=39 // pred_check
          %p1313 = pneg %p312
        $region46: #{tpu_custom_call.1} parent=39 // pred_check_branch
          %1315 = sbr.rel (%p1313) target = $region48
        $region47: #{tpu_custom_call.1} parent=39 // pred_region
          %v1316 = vld [vmem:[%s4] sm:$0xff]
          %v1317 = vld [vmem:[%s4 + $0x8] sm:$0xff]
          %v1318 = vadd.f32 %v1297, %v1316
          %v1319 = vadd.f32 %v1298, %v1317
          %1320 = vst [vmem:[%s278] sm:$0xff] %v1318
          %1321 = vst [vmem:[%s278 + $0x8] sm:$0xff] %v1319
        $region48: #{tpu_custom_call.1} parent=39 // pred_fallthru
          _
        %s1322 = sand.u32 %s151, 1
        %s1323 = scalar_lea.sflag [#allocation4], %s1322
        %s1324 = sand.u32 %s151, 1
        %s1325 = smul.addr %s1324, 64
        %s1326 = scalar_lea.vmem [#allocation5], %s1325
        // Predicated region
        $region49: #{tpu_custom_call.1} parent=39 // pred_check
          %p1327 = pneg %p161
        $region50: #{tpu_custom_call.1} parent=39 // pred_check_branch
          %1329 = sbr.rel (%p1327) target = $region52
        $region51: #{tpu_custom_call.1} parent=39 // pred_region
          %s1330 = smul.u32 4, %s20
          %s1331 = ssub.s32 10, %s1330
          %p1332 = scmp.lt.s32.totalorder %s1331, 4
          %s1333 = scalar_select %p1332, %s1331, 4
          %s1334 = smul.u32 128, %s1333
          %s1335 = smul.u32 %s1334, 2
          %s1337 = ssub.s32 1024, %s1335
          %1338 = vsyncadd %s1323, %s1337
          %p1339 = scmp.ne.s32.totalorder 0, %s1335
          %s1340 = smul.addr %s1330, 2
          %s1341 = smul.addr %s1340, 128
          %s1342 = scalar_lea.hbm %s5, %s1341
          %s1343 = smul.u32 16, %s1333
          %s1344 = sshll.u32 %s1326, 4
          %s1345 = int_to_ptr.vmem [resolvable:$true] %s1344
          %s1346 = sshll.u32 %s1343, 4
          %1350 = dma.vmem_to_hbm [thread:$0]  (%p1339), %s1345, %s1346, %s1342, %s1323, 256, 256, 16
        $region52: #{tpu_custom_call.1} parent=39 // pred_fallthru
          _
      $region40: #{tpu_custom_call.1} parent=5 // pred_fallthru
        _
      %p1351 = scmp.le.s32.totalorder 2, %s15
      // Predicated region
      $region53: #{tpu_custom_call.1} parent=5 // pred_check
        %p1352 = pneg %p1351
      $region54: #{tpu_custom_call.1} parent=5 // pred_check_branch
        %1354 = sbr.rel (%p1352) target = $region56
      $region55: #{tpu_custom_call.1} parent=5 // pred_region
        %s1355 = ssub.s32 %s15, 2
        // Predicated region
        $region57: #{tpu_custom_call.1} parent=55 // pred_check
          %p1356 = pneg %p167
        $region58: #{tpu_custom_call.1} parent=55 // pred_check_branch
          %1358 = sbr.rel (%p1356) target = $region60
        $region59: #{tpu_custom_call.1} parent=55 // pred_region
          %s1359 = sand.u32 %s152, 1
          %s1360 = scalar_lea.sflag [#allocation4], %s1359
          %s1361 = sand.u32 %s152, 1
          %s1362 = smul.addr %s1361, 64
          %s1363 = scalar_lea.vmem [#allocation5], %s1362
          %1364 = dma.done %s1360, 1024
        $region60: #{tpu_custom_call.1} parent=55 // pred_fallthru
          _
      $region56: #{tpu_custom_call.1} parent=5 // pred_fallthru
        _
    $region6: #{tpu_custom_call.1} parent=1 // loop_footer
      %s19 = sadd.s32 1, %s15
    $region7: #{tpu_custom_call.1} parent=1 // loop_footer_branch
      %14 = sbr.rel target = $region3
    $region8: #{tpu_custom_call.1} parent=1 // loop_exit
      _
    %1365 = vsyncpa [#allocation3], 1
    %s1366 = scalar_lea.sflag [#allocation3], 1
    %1367 = vsyncpa %s1366, 1
    %1368 = vsyncpa [#allocation4], 1
    %s1369 = scalar_lea.sflag [#allocation4], 1
    %1370 = vsyncpa %s1369, 1

</llo_original>
